<compile_context>
chip_gen: v5e
topology: v5e:2x2
jax: 0.10.0
libtpu: 0.0.40
codegen_flags: <defaults>
</compile_context>

<pallas_src>
import jax
import jax.numpy as jnp
from jax.experimental import pallas as pl
from jax.experimental.pallas import tpu as pltpu


def ppeg_kernel(x_ref, w_ref, b_ref, o_ref):
    """One (batch, row-strip) grid step of the folded depthwise-conv PPEG.

    x_ref: (1, H+6, W+6, C) zero-padded image, resident across the strip axis.
    w_ref: (49, C) merged depthwise weights (identity residual folded into tap 24).
    b_ref: (1, C)  merged bias.
    o_ref: (1, S, W, C) output row strip.
    """
    S, W, C = o_ref.shape[1], o_ref.shape[2], o_ref.shape[3]

    # First padded row needed by this strip (strip s covers output rows [s*S, s*S+S)).
    r0 = pl.multiple_of(pl.program_id(1) * S, S)

    # Hoist the 7 column (sublane) shifts: one unaligned slice per kw, shared by all
    # 7 kh taps.  Row offsets inside the tap loop are leading-dim slices -> no
    # sublane relayout in the inner loop.
    slabs = [x_ref[0, pl.ds(r0, S + 6), pl.ds(kw, W), :] for kw in range(7)]

    # Lane-aligned (1, C) weight rows, loaded once; broadcast in the multiply.
    wt = [w_ref[pl.ds(t, 1), :] for t in range(49)]
    bias = b_ref[...]                                        # (1, C), f32

    # 49-tap multiply-accumulate into two independent partial sums so the scheduler
    # can fill the VALU slots; accumulation is f32 (weights are f32) even for bf16 x.
    acc = [None, None]
    for kh in range(7):
        for kw in range(7):
            t = kh * 7 + kw
            term = slabs[kw][kh:kh + S] * wt[t]              # (S, W, C)
            acc[t & 1] = term if acc[t & 1] is None else acc[t & 1] + term
    out = acc[0] + acc[1] + bias

    o_ref[...] = out[None].astype(o_ref.dtype)               # single store per strip


def _fold_params(params):
    """Merge 7x7 + 5x5 + 3x3 depthwise kernels and the identity residual into one
    effective 7x7 kernel (49, C) and one bias (1, C)."""
    C = params['w7'].shape[-1]
    w = params['w7'].astype(jnp.float32).reshape(7, 7, C)
    w = w.at[1:6, 1:6, :].add(params['w5'].astype(jnp.float32).reshape(5, 5, C))
    w = w.at[2:5, 2:5, :].add(params['w3'].astype(jnp.float32).reshape(3, 3, C))
    w = w.at[3, 3, :].add(1.0)                               # identity residual
    b = (params['b7'] + params['b5'] + params['b3']).astype(jnp.float32)
    return w.reshape(49, C), b.reshape(1, C)


def _pick_strip_rows(H, W, C, itemsize, target_bytes=256 * 1024):
    """Largest divisor of H whose (S, W, C) strip accumulator stays small enough to
    remain register/VMEM-resident across all 49 taps."""
    best = 1
    for s in range(1, H + 1):
        if H % s == 0 and s * W * C * itemsize <= target_bytes:
            best = s
    return best


def ppeg_forward(x, params, H, W):
    """x: (B, 1 + H*W, C).  Returns (B, 1 + H*W, C)."""
    B, N, C = x.shape
    assert N == 1 + H * W

    cls_tok = x[:, :1, :]                                    # (B, 1, C) pass-through
    feat = x[:, 1:, :].reshape(B, H, W, C)                   # NHWC, C on lanes
    feat_p = jnp.pad(feat, ((0, 0), (3, 3), (3, 3), (0, 0))) # shared pad-3 halo
    # TODO(synk): the token slice/pad above and the concat below each cost ~one extra
    # HBM pass; removing them requires the kernel to read/write the (B, 1+H*W, C)
    # token layout directly (offset-by-one output blocks + in-kernel
    # (rows,W,C)<->(rows*W,C) reshapes) -- deferred.

    w_eff, b_eff = _fold_params(params)

    itemsize = jnp.dtype(x.dtype).itemsize
    S = _pick_strip_rows(H, W, C, itemsize)
    n_strips = H // S

    # VMEM budget derived from actual block sizes: resident padded image (x2 for
    # double buffering), double-buffered output strips, weights, slab temporaries.
    in_bytes = 2 * (H + 6) * (W + 6) * C * itemsize
    out_bytes = 2 * S * W * C * itemsize
    wgt_bytes = (56 + 8) * C * 4
    tmp_bytes = (7 * (S + 6) + 2 * S) * W * C * 4
    vmem_limit = int(min(128 * 1024 * 1024,
                         max(32 * 1024 * 1024,
                             1.25 * (in_bytes + out_bytes + wgt_bytes + tmp_bytes))))

    cost = pl.CostEstimate(
        flops=2 * 49 * B * H * W * C,
        transcendentals=0,
        bytes_accessed=(feat_p.size + B * H * W * C) * itemsize
                       + (w_eff.size + b_eff.size) * 4,
    )

    out = pl.pallas_call(
        ppeg_kernel,
        out_shape=jax.ShapeDtypeStruct((B, H, W, C), x.dtype),
        grid_spec=pltpu.PrefetchScalarGridSpec(
            num_scalar_prefetch=0,
            grid=(B, n_strips),
            in_specs=[
                # Padded image: one block per batch item, resident across strips.
                pl.BlockSpec((1, H + 6, W + 6, C), lambda b, s: (b, 0, 0, 0)),
                pl.BlockSpec((49, C), lambda b, s: (0, 0)),
                pl.BlockSpec((1, C), lambda b, s: (0, 0)),
            ],
            out_specs=pl.BlockSpec((1, S, W, C), lambda b, s: (b, s, 0, 0)),
        ),
        compiler_params=pltpu.CompilerParams(
            dimension_semantics=("parallel", "parallel"),
            vmem_limit_bytes=vmem_limit,
        ),
        cost_estimate=cost,
    )(feat_p, w_eff, b_eff)

    out = out.reshape(B, H * W, C)
    return jnp.concatenate([cls_tok, out], axis=1)


def ppeg_reference(x, params, H, W):
    """Plain-JAX mirror of the PyTorch forward (independent check via lax conv)."""
    B, N, C = x.shape
    cls_tok = x[:, :1, :]
    feat = x[:, 1:, :].reshape(B, H, W, C)

    def dwconv(f, w_flat, b, k):
        w = w_flat.reshape(k, k, 1, C)                       # HWIO, groups = C
        y = jax.lax.conv_general_dilated(
            f, w, window_strides=(1, 1), padding='SAME',
            dimension_numbers=('NHWC', 'HWIO', 'NHWC'),
            feature_group_count=C)
        return y + b.reshape(1, 1, 1, C)

    y = (feat
         + dwconv(feat, params['w7'], params['b7'], 7)
         + dwconv(feat, params['w5'], params['b5'], 5)
         + dwconv(feat, params['w3'], params['b3'], 3))
    return jnp.concatenate([cls_tok, y.reshape(B, H * W, C)], axis=1)


def init_params(key, dim):
    ks = jax.random.split(key, 6)
    scale = 0.1
    # depthwise weights stored as (k*k, C): row = tap (kh*k+kw), lane = channel
    # (== PyTorch Conv2d weight[c, 0, kh, kw]); biases as (1, C).
    return {
        'w7': scale * jax.random.normal(ks[0], (7 * 7, dim), jnp.float32),
        'b7': scale * jax.random.normal(ks[1], (1, dim), jnp.float32),
        'w5': scale * jax.random.normal(ks[2], (5 * 5, dim), jnp.float32),
        'b5': scale * jax.random.normal(ks[3], (1, dim), jnp.float32),
        'w3': scale * jax.random.normal(ks[4], (3 * 3, dim), jnp.float32),
        'b3': scale * jax.random.normal(ks[5], (1, dim), jnp.float32),
    }


if __name__ == "__main__":
    B, H, W, C = 2, 8, 8, 128      # small demo: 128 channels = one full lane width

    key = jax.random.PRNGKey(0)
    kx, kp = jax.random.split(key)
    x = jax.random.normal(kx, (B, 1 + H * W, C), jnp.float32)
    params = init_params(kp, C)

    out = jax.block_until_ready(ppeg_forward(x, params, H, W))
    ref = jax.block_until_ready(ppeg_reference(x, params, H, W))

    assert out.shape == (B, 1 + H * W, C)
    err = float(jnp.max(jnp.abs(out - ref)))
    assert jnp.allclose(out, ref, atol=1e-4, rtol=1e-4), err
    print("KERNEL_OK")
</pallas_src>

<mosaic_0001>
module attributes {stable_mosaic.version = 11 : i64} {
  func.func @ppeg_kernel(%arg0: i32, %arg1: i32, %arg2: memref<1x14x14x128xf32, #tpu.memory_space<vmem>>, %arg3: memref<49x128xf32, #tpu.memory_space<vmem>>, %arg4: memref<1x128xf32, #tpu.memory_space<vmem>>, %arg5: memref<1x8x8x128xf32, #tpu.memory_space<vmem>>) attributes {dimension_semantics = [#tpu.dimension_semantics<parallel>, #tpu.dimension_semantics<parallel>], iteration_bounds = array<i64: 2, 1>, scalar_prefetch = 0 : i64, scratch_operands = 0 : i64, tpu.core_type = #tpu.core_type<tc>, window_params = [{transform_indices = @transform_0, window_bounds = array<i64: 1, 14, 14, 128>}, {pipeline_mode = #tpu.pipeline_mode<synchronous>, transform_indices = @transform_1, window_bounds = array<i64: 49, 128>}, {pipeline_mode = #tpu.pipeline_mode<synchronous>, transform_indices = @transform_2, window_bounds = array<i64: 1, 128>}, {transform_indices = @transform_3, window_bounds = array<i64: 1, 8, 8, 128>}]} {
    %c8_i32 = arith.constant 8 : i32
    %0 = arith.muli %arg1, %c8_i32 : i32
    %1 = tpu.assume_multiple %0, 8 : i32
    %c0 = arith.constant 0 : index
    %2 = arith.index_cast %1 : i32 to index
    %c0_0 = arith.constant 0 : index
    %c0_1 = arith.constant 0 : index
    %3 = vector.load %arg2[%c0, %2, %c0_0, %c0_1] : memref<1x14x14x128xf32, #tpu.memory_space<vmem>>, vector<1x14x8x128xf32>
    %4 = vector.shape_cast %3 : vector<1x14x8x128xf32> to vector<14x8x128xf32>
    %c0_2 = arith.constant 0 : index
    %5 = arith.index_cast %1 : i32 to index
    %c1 = arith.constant 1 : index
    %c0_3 = arith.constant 0 : index
    %6 = vector.load %arg2[%c0_2, %5, %c1, %c0_3] : memref<1x14x14x128xf32, #tpu.memory_space<vmem>>, vector<1x14x8x128xf32>
    %7 = vector.shape_cast %6 : vector<1x14x8x128xf32> to vector<14x8x128xf32>
    %c0_4 = arith.constant 0 : index
    %8 = arith.index_cast %1 : i32 to index
    %c2 = arith.constant 2 : index
    %c0_5 = arith.constant 0 : index
    %9 = vector.load %arg2[%c0_4, %8, %c2, %c0_5] : memref<1x14x14x128xf32, #tpu.memory_space<vmem>>, vector<1x14x8x128xf32>
    %10 = vector.shape_cast %9 : vector<1x14x8x128xf32> to vector<14x8x128xf32>
    %c0_6 = arith.constant 0 : index
    %11 = arith.index_cast %1 : i32 to index
    %c3 = arith.constant 3 : index
    %c0_7 = arith.constant 0 : index
    %12 = vector.load %arg2[%c0_6, %11, %c3, %c0_7] : memref<1x14x14x128xf32, #tpu.memory_space<vmem>>, vector<1x14x8x128xf32>
    %13 = vector.shape_cast %12 : vector<1x14x8x128xf32> to vector<14x8x128xf32>
    %c0_8 = arith.constant 0 : index
    %14 = arith.index_cast %1 : i32 to index
    %c4 = arith.constant 4 : index
    %c0_9 = arith.constant 0 : index
    %15 = vector.load %arg2[%c0_8, %14, %c4, %c0_9] : memref<1x14x14x128xf32, #tpu.memory_space<vmem>>, vector<1x14x8x128xf32>
    %16 = vector.shape_cast %15 : vector<1x14x8x128xf32> to vector<14x8x128xf32>
    %c0_10 = arith.constant 0 : index
    %17 = arith.index_cast %1 : i32 to index
    %c5 = arith.constant 5 : index
    %c0_11 = arith.constant 0 : index
    %18 = vector.load %arg2[%c0_10, %17, %c5, %c0_11] : memref<1x14x14x128xf32, #tpu.memory_space<vmem>>, vector<1x14x8x128xf32>
    %19 = vector.shape_cast %18 : vector<1x14x8x128xf32> to vector<14x8x128xf32>
    %c0_12 = arith.constant 0 : index
    %20 = arith.index_cast %1 : i32 to index
    %c6 = arith.constant 6 : index
    %c0_13 = arith.constant 0 : index
    %21 = vector.load %arg2[%c0_12, %20, %c6, %c0_13] : memref<1x14x14x128xf32, #tpu.memory_space<vmem>>, vector<1x14x8x128xf32>
    %22 = vector.shape_cast %21 : vector<1x14x8x128xf32> to vector<14x8x128xf32>
    %c0_14 = arith.constant 0 : index
    %c0_15 = arith.constant 0 : index
    %23 = vector.load %arg3[%c0_14, %c0_15] : memref<49x128xf32, #tpu.memory_space<vmem>>, vector<1x128xf32>
    %c1_16 = arith.constant 1 : index
    %c0_17 = arith.constant 0 : index
    %24 = vector.load %arg3[%c1_16, %c0_17] : memref<49x128xf32, #tpu.memory_space<vmem>>, vector<1x128xf32>
    %c2_18 = arith.constant 2 : index
    %c0_19 = arith.constant 0 : index
    %25 = vector.load %arg3[%c2_18, %c0_19] : memref<49x128xf32, #tpu.memory_space<vmem>>, vector<1x128xf32>
    %c3_20 = arith.constant 3 : index
    %c0_21 = arith.constant 0 : index
    %26 = vector.load %arg3[%c3_20, %c0_21] : memref<49x128xf32, #tpu.memory_space<vmem>>, vector<1x128xf32>
    %c4_22 = arith.constant 4 : index
    %c0_23 = arith.constant 0 : index
    %27 = vector.load %arg3[%c4_22, %c0_23] : memref<49x128xf32, #tpu.memory_space<vmem>>, vector<1x128xf32>
    %c5_24 = arith.constant 5 : index
    %c0_25 = arith.constant 0 : index
    %28 = vector.load %arg3[%c5_24, %c0_25] : memref<49x128xf32, #tpu.memory_space<vmem>>, vector<1x128xf32>
    %c6_26 = arith.constant 6 : index
    %c0_27 = arith.constant 0 : index
    %29 = vector.load %arg3[%c6_26, %c0_27] : memref<49x128xf32, #tpu.memory_space<vmem>>, vector<1x128xf32>
    %c7 = arith.constant 7 : index
    %c0_28 = arith.constant 0 : index
    %30 = vector.load %arg3[%c7, %c0_28] : memref<49x128xf32, #tpu.memory_space<vmem>>, vector<1x128xf32>
    %c8 = arith.constant 8 : index
    %c0_29 = arith.constant 0 : index
    %31 = vector.load %arg3[%c8, %c0_29] : memref<49x128xf32, #tpu.memory_space<vmem>>, vector<1x128xf32>
    %c9 = arith.constant 9 : index
    %c0_30 = arith.constant 0 : index
    %32 = vector.load %arg3[%c9, %c0_30] : memref<49x128xf32, #tpu.memory_space<vmem>>, vector<1x128xf32>
    %c10 = arith.constant 10 : index
    %c0_31 = arith.constant 0 : index
    %33 = vector.load %arg3[%c10, %c0_31] : memref<49x128xf32, #tpu.memory_space<vmem>>, vector<1x128xf32>
    %c11 = arith.constant 11 : index
    %c0_32 = arith.constant 0 : index
    %34 = vector.load %arg3[%c11, %c0_32] : memref<49x128xf32, #tpu.memory_space<vmem>>, vector<1x128xf32>
    %c12 = arith.constant 12 : index
    %c0_33 = arith.constant 0 : index
    %35 = vector.load %arg3[%c12, %c0_33] : memref<49x128xf32, #tpu.memory_space<vmem>>, vector<1x128xf32>
    %c13 = arith.constant 13 : index
    %c0_34 = arith.constant 0 : index
    %36 = vector.load %arg3[%c13, %c0_34] : memref<49x128xf32, #tpu.memory_space<vmem>>, vector<1x128xf32>
    %c14 = arith.constant 14 : index
    %c0_35 = arith.constant 0 : index
    %37 = vector.load %arg3[%c14, %c0_35] : memref<49x128xf32, #tpu.memory_space<vmem>>, vector<1x128xf32>
    %c15 = arith.constant 15 : index
    %c0_36 = arith.constant 0 : index
    %38 = vector.load %arg3[%c15, %c0_36] : memref<49x128xf32, #tpu.memory_space<vmem>>, vector<1x128xf32>
    %c16 = arith.constant 16 : index
    %c0_37 = arith.constant 0 : index
    %39 = vector.load %arg3[%c16, %c0_37] : memref<49x128xf32, #tpu.memory_space<vmem>>, vector<1x128xf32>
    %c17 = arith.constant 17 : index
    %c0_38 = arith.constant 0 : index
    %40 = vector.load %arg3[%c17, %c0_38] : memref<49x128xf32, #tpu.memory_space<vmem>>, vector<1x128xf32>
    %c18 = arith.constant 18 : index
    %c0_39 = arith.constant 0 : index
    %41 = vector.load %arg3[%c18, %c0_39] : memref<49x128xf32, #tpu.memory_space<vmem>>, vector<1x128xf32>
    %c19 = arith.constant 19 : index
    %c0_40 = arith.constant 0 : index
    %42 = vector.load %arg3[%c19, %c0_40] : memref<49x128xf32, #tpu.memory_space<vmem>>, vector<1x128xf32>
    %c20 = arith.constant 20 : index
    %c0_41 = arith.constant 0 : index
    %43 = vector.load %arg3[%c20, %c0_41] : memref<49x128xf32, #tpu.memory_space<vmem>>, vector<1x128xf32>
    %c21 = arith.constant 21 : index
    %c0_42 = arith.constant 0 : index
    %44 = vector.load %arg3[%c21, %c0_42] : memref<49x128xf32, #tpu.memory_space<vmem>>, vector<1x128xf32>
    %c22 = arith.constant 22 : index
    %c0_43 = arith.constant 0 : index
    %45 = vector.load %arg3[%c22, %c0_43] : memref<49x128xf32, #tpu.memory_space<vmem>>, vector<1x128xf32>
    %c23 = arith.constant 23 : index
    %c0_44 = arith.constant 0 : index
    %46 = vector.load %arg3[%c23, %c0_44] : memref<49x128xf32, #tpu.memory_space<vmem>>, vector<1x128xf32>
    %c24 = arith.constant 24 : index
    %c0_45 = arith.constant 0 : index
    %47 = vector.load %arg3[%c24, %c0_45] : memref<49x128xf32, #tpu.memory_space<vmem>>, vector<1x128xf32>
    %c25 = arith.constant 25 : index
    %c0_46 = arith.constant 0 : index
    %48 = vector.load %arg3[%c25, %c0_46] : memref<49x128xf32, #tpu.memory_space<vmem>>, vector<1x128xf32>
    %c26 = arith.constant 26 : index
    %c0_47 = arith.constant 0 : index
    %49 = vector.load %arg3[%c26, %c0_47] : memref<49x128xf32, #tpu.memory_space<vmem>>, vector<1x128xf32>
    %c27 = arith.constant 27 : index
    %c0_48 = arith.constant 0 : index
    %50 = vector.load %arg3[%c27, %c0_48] : memref<49x128xf32, #tpu.memory_space<vmem>>, vector<1x128xf32>
    %c28 = arith.constant 28 : index
    %c0_49 = arith.constant 0 : index
    %51 = vector.load %arg3[%c28, %c0_49] : memref<49x128xf32, #tpu.memory_space<vmem>>, vector<1x128xf32>
    %c29 = arith.constant 29 : index
    %c0_50 = arith.constant 0 : index
    %52 = vector.load %arg3[%c29, %c0_50] : memref<49x128xf32, #tpu.memory_space<vmem>>, vector<1x128xf32>
    %c30 = arith.constant 30 : index
    %c0_51 = arith.constant 0 : index
    %53 = vector.load %arg3[%c30, %c0_51] : memref<49x128xf32, #tpu.memory_space<vmem>>, vector<1x128xf32>
    %c31 = arith.constant 31 : index
    %c0_52 = arith.constant 0 : index
    %54 = vector.load %arg3[%c31, %c0_52] : memref<49x128xf32, #tpu.memory_space<vmem>>, vector<1x128xf32>
    %c32 = arith.constant 32 : index
    %c0_53 = arith.constant 0 : index
    %55 = vector.load %arg3[%c32, %c0_53] : memref<49x128xf32, #tpu.memory_space<vmem>>, vector<1x128xf32>
    %c33 = arith.constant 33 : index
    %c0_54 = arith.constant 0 : index
    %56 = vector.load %arg3[%c33, %c0_54] : memref<49x128xf32, #tpu.memory_space<vmem>>, vector<1x128xf32>
    %c34 = arith.constant 34 : index
    %c0_55 = arith.constant 0 : index
    %57 = vector.load %arg3[%c34, %c0_55] : memref<49x128xf32, #tpu.memory_space<vmem>>, vector<1x128xf32>
    %c35 = arith.constant 35 : index
    %c0_56 = arith.constant 0 : index
    %58 = vector.load %arg3[%c35, %c0_56] : memref<49x128xf32, #tpu.memory_space<vmem>>, vector<1x128xf32>
    %c36 = arith.constant 36 : index
    %c0_57 = arith.constant 0 : index
    %59 = vector.load %arg3[%c36, %c0_57] : memref<49x128xf32, #tpu.memory_space<vmem>>, vector<1x128xf32>
    %c37 = arith.constant 37 : index
    %c0_58 = arith.constant 0 : index
    %60 = vector.load %arg3[%c37, %c0_58] : memref<49x128xf32, #tpu.memory_space<vmem>>, vector<1x128xf32>
    %c38 = arith.constant 38 : index
    %c0_59 = arith.constant 0 : index
    %61 = vector.load %arg3[%c38, %c0_59] : memref<49x128xf32, #tpu.memory_space<vmem>>, vector<1x128xf32>
    %c39 = arith.constant 39 : index
    %c0_60 = arith.constant 0 : index
    %62 = vector.load %arg3[%c39, %c0_60] : memref<49x128xf32, #tpu.memory_space<vmem>>, vector<1x128xf32>
    %c40 = arith.constant 40 : index
    %c0_61 = arith.constant 0 : index
    %63 = vector.load %arg3[%c40, %c0_61] : memref<49x128xf32, #tpu.memory_space<vmem>>, vector<1x128xf32>
    %c41 = arith.constant 41 : index
    %c0_62 = arith.constant 0 : index
    %64 = vector.load %arg3[%c41, %c0_62] : memref<49x128xf32, #tpu.memory_space<vmem>>, vector<1x128xf32>
    %c42 = arith.constant 42 : index
    %c0_63 = arith.constant 0 : index
    %65 = vector.load %arg3[%c42, %c0_63] : memref<49x128xf32, #tpu.memory_space<vmem>>, vector<1x128xf32>
    %c43 = arith.constant 43 : index
    %c0_64 = arith.constant 0 : index
    %66 = vector.load %arg3[%c43, %c0_64] : memref<49x128xf32, #tpu.memory_space<vmem>>, vector<1x128xf32>
    %c44 = arith.constant 44 : index
    %c0_65 = arith.constant 0 : index
    %67 = vector.load %arg3[%c44, %c0_65] : memref<49x128xf32, #tpu.memory_space<vmem>>, vector<1x128xf32>
    %c45 = arith.constant 45 : index
    %c0_66 = arith.constant 0 : index
    %68 = vector.load %arg3[%c45, %c0_66] : memref<49x128xf32, #tpu.memory_space<vmem>>, vector<1x128xf32>
    %c46 = arith.constant 46 : index
    %c0_67 = arith.constant 0 : index
    %69 = vector.load %arg3[%c46, %c0_67] : memref<49x128xf32, #tpu.memory_space<vmem>>, vector<1x128xf32>
    %c47 = arith.constant 47 : index
    %c0_68 = arith.constant 0 : index
    %70 = vector.load %arg3[%c47, %c0_68] : memref<49x128xf32, #tpu.memory_space<vmem>>, vector<1x128xf32>
    %c48 = arith.constant 48 : index
    %c0_69 = arith.constant 0 : index
    %71 = vector.load %arg3[%c48, %c0_69] : memref<49x128xf32, #tpu.memory_space<vmem>>, vector<1x128xf32>
    %c0_70 = arith.constant 0 : index
    %c0_71 = arith.constant 0 : index
    %72 = vector.load %arg4[%c0_70, %c0_71] : memref<1x128xf32, #tpu.memory_space<vmem>>, vector<1x128xf32>
    %73 = vector.extract_strided_slice %4 {offsets = [0, 0, 0], sizes = [8, 8, 128], strides = [1, 1, 1]} : vector<14x8x128xf32> to vector<8x8x128xf32>
    %74 = vector.shape_cast %23 : vector<1x128xf32> to vector<1x1x128xf32>
    %75 = vector.broadcast %74 : vector<1x1x128xf32> to vector<8x8x128xf32>
    %76 = arith.mulf %73, %75 : vector<8x8x128xf32>
    %77 = vector.extract_strided_slice %7 {offsets = [0, 0, 0], sizes = [8, 8, 128], strides = [1, 1, 1]} : vector<14x8x128xf32> to vector<8x8x128xf32>
    %78 = vector.shape_cast %24 : vector<1x128xf32> to vector<1x1x128xf32>
    %79 = vector.broadcast %78 : vector<1x1x128xf32> to vector<8x8x128xf32>
    %80 = arith.mulf %77, %79 : vector<8x8x128xf32>
    %81 = vector.extract_strided_slice %10 {offsets = [0, 0, 0], sizes = [8, 8, 128], strides = [1, 1, 1]} : vector<14x8x128xf32> to vector<8x8x128xf32>
    %82 = vector.shape_cast %25 : vector<1x128xf32> to vector<1x1x128xf32>
    %83 = vector.broadcast %82 : vector<1x1x128xf32> to vector<8x8x128xf32>
    %84 = arith.mulf %81, %83 : vector<8x8x128xf32>
    %85 = arith.addf %76, %84 : vector<8x8x128xf32>
    %86 = vector.extract_strided_slice %13 {offsets = [0, 0, 0], sizes = [8, 8, 128], strides = [1, 1, 1]} : vector<14x8x128xf32> to vector<8x8x128xf32>
    %87 = vector.shape_cast %26 : vector<1x128xf32> to vector<1x1x128xf32>
    %88 = vector.broadcast %87 : vector<1x1x128xf32> to vector<8x8x128xf32>
    %89 = arith.mulf %86, %88 : vector<8x8x128xf32>
    %90 = arith.addf %80, %89 : vector<8x8x128xf32>
    %91 = vector.extract_strided_slice %16 {offsets = [0, 0, 0], sizes = [8, 8, 128], strides = [1, 1, 1]} : vector<14x8x128xf32> to vector<8x8x128xf32>
    %92 = vector.shape_cast %27 : vector<1x128xf32> to vector<1x1x128xf32>
    %93 = vector.broadcast %92 : vector<1x1x128xf32> to vector<8x8x128xf32>
    %94 = arith.mulf %91, %93 : vector<8x8x128xf32>
    %95 = arith.addf %85, %94 : vector<8x8x128xf32>
    %96 = vector.extract_strided_slice %19 {offsets = [0, 0, 0], sizes = [8, 8, 128], strides = [1, 1, 1]} : vector<14x8x128xf32> to vector<8x8x128xf32>
    %97 = vector.shape_cast %28 : vector<1x128xf32> to vector<1x1x128xf32>
    %98 = vector.broadcast %97 : vector<1x1x128xf32> to vector<8x8x128xf32>
    %99 = arith.mulf %96, %98 : vector<8x8x128xf32>
    %100 = arith.addf %90, %99 : vector<8x8x128xf32>
    %101 = vector.extract_strided_slice %22 {offsets = [0, 0, 0], sizes = [8, 8, 128], strides = [1, 1, 1]} : vector<14x8x128xf32> to vector<8x8x128xf32>
    %102 = vector.shape_cast %29 : vector<1x128xf32> to vector<1x1x128xf32>
    %103 = vector.broadcast %102 : vector<1x1x128xf32> to vector<8x8x128xf32>
    %104 = arith.mulf %101, %103 : vector<8x8x128xf32>
    %105 = arith.addf %95, %104 : vector<8x8x128xf32>
    %106 = vector.extract_strided_slice %4 {offsets = [1, 0, 0], sizes = [8, 8, 128], strides = [1, 1, 1]} : vector<14x8x128xf32> to vector<8x8x128xf32>
    %107 = vector.shape_cast %30 : vector<1x128xf32> to vector<1x1x128xf32>
    %108 = vector.broadcast %107 : vector<1x1x128xf32> to vector<8x8x128xf32>
    %109 = arith.mulf %106, %108 : vector<8x8x128xf32>
    %110 = arith.addf %100, %109 : vector<8x8x128xf32>
    %111 = vector.extract_strided_slice %7 {offsets = [1, 0, 0], sizes = [8, 8, 128], strides = [1, 1, 1]} : vector<14x8x128xf32> to vector<8x8x128xf32>
    %112 = vector.shape_cast %31 : vector<1x128xf32> to vector<1x1x128xf32>
    %113 = vector.broadcast %112 : vector<1x1x128xf32> to vector<8x8x128xf32>
    %114 = arith.mulf %111, %113 : vector<8x8x128xf32>
    %115 = arith.addf %105, %114 : vector<8x8x128xf32>
    %116 = vector.extract_strided_slice %10 {offsets = [1, 0, 0], sizes = [8, 8, 128], strides = [1, 1, 1]} : vector<14x8x128xf32> to vector<8x8x128xf32>
    %117 = vector.shape_cast %32 : vector<1x128xf32> to vector<1x1x128xf32>
    %118 = vector.broadcast %117 : vector<1x1x128xf32> to vector<8x8x128xf32>
    %119 = arith.mulf %116, %118 : vector<8x8x128xf32>
    %120 = arith.addf %110, %119 : vector<8x8x128xf32>
    %121 = vector.extract_strided_slice %13 {offsets = [1, 0, 0], sizes = [8, 8, 128], strides = [1, 1, 1]} : vector<14x8x128xf32> to vector<8x8x128xf32>
    %122 = vector.shape_cast %33 : vector<1x128xf32> to vector<1x1x128xf32>
    %123 = vector.broadcast %122 : vector<1x1x128xf32> to vector<8x8x128xf32>
    %124 = arith.mulf %121, %123 : vector<8x8x128xf32>
    %125 = arith.addf %115, %124 : vector<8x8x128xf32>
    %126 = vector.extract_strided_slice %16 {offsets = [1, 0, 0], sizes = [8, 8, 128], strides = [1, 1, 1]} : vector<14x8x128xf32> to vector<8x8x128xf32>
    %127 = vector.shape_cast %34 : vector<1x128xf32> to vector<1x1x128xf32>
    %128 = vector.broadcast %127 : vector<1x1x128xf32> to vector<8x8x128xf32>
    %129 = arith.mulf %126, %128 : vector<8x8x128xf32>
    %130 = arith.addf %120, %129 : vector<8x8x128xf32>
    %131 = vector.extract_strided_slice %19 {offsets = [1, 0, 0], sizes = [8, 8, 128], strides = [1, 1, 1]} : vector<14x8x128xf32> to vector<8x8x128xf32>
    %132 = vector.shape_cast %35 : vector<1x128xf32> to vector<1x1x128xf32>
    %133 = vector.broadcast %132 : vector<1x1x128xf32> to vector<8x8x128xf32>
    %134 = arith.mulf %131, %133 : vector<8x8x128xf32>
    %135 = arith.addf %125, %134 : vector<8x8x128xf32>
    %136 = vector.extract_strided_slice %22 {offsets = [1, 0, 0], sizes = [8, 8, 128], strides = [1, 1, 1]} : vector<14x8x128xf32> to vector<8x8x128xf32>
    %137 = vector.shape_cast %36 : vector<1x128xf32> to vector<1x1x128xf32>
    %138 = vector.broadcast %137 : vector<1x1x128xf32> to vector<8x8x128xf32>
    %139 = arith.mulf %136, %138 : vector<8x8x128xf32>
    %140 = arith.addf %130, %139 : vector<8x8x128xf32>
    %141 = vector.extract_strided_slice %4 {offsets = [2, 0, 0], sizes = [8, 8, 128], strides = [1, 1, 1]} : vector<14x8x128xf32> to vector<8x8x128xf32>
    %142 = vector.shape_cast %37 : vector<1x128xf32> to vector<1x1x128xf32>
    %143 = vector.broadcast %142 : vector<1x1x128xf32> to vector<8x8x128xf32>
    %144 = arith.mulf %141, %143 : vector<8x8x128xf32>
    %145 = arith.addf %135, %144 : vector<8x8x128xf32>
    %146 = vector.extract_strided_slice %7 {offsets = [2, 0, 0], sizes = [8, 8, 128], strides = [1, 1, 1]} : vector<14x8x128xf32> to vector<8x8x128xf32>
    %147 = vector.shape_cast %38 : vector<1x128xf32> to vector<1x1x128xf32>
    %148 = vector.broadcast %147 : vector<1x1x128xf32> to vector<8x8x128xf32>
    %149 = arith.mulf %146, %148 : vector<8x8x128xf32>
    %150 = arith.addf %140, %149 : vector<8x8x128xf32>
    %151 = vector.extract_strided_slice %10 {offsets = [2, 0, 0], sizes = [8, 8, 128], strides = [1, 1, 1]} : vector<14x8x128xf32> to vector<8x8x128xf32>
    %152 = vector.shape_cast %39 : vector<1x128xf32> to vector<1x1x128xf32>
    %153 = vector.broadcast %152 : vector<1x1x128xf32> to vector<8x8x128xf32>
    %154 = arith.mulf %151, %153 : vector<8x8x128xf32>
    %155 = arith.addf %145, %154 : vector<8x8x128xf32>
    %156 = vector.extract_strided_slice %13 {offsets = [2, 0, 0], sizes = [8, 8, 128], strides = [1, 1, 1]} : vector<14x8x128xf32> to vector<8x8x128xf32>
    %157 = vector.shape_cast %40 : vector<1x128xf32> to vector<1x1x128xf32>
    %158 = vector.broadcast %157 : vector<1x1x128xf32> to vector<8x8x128xf32>
    %159 = arith.mulf %156, %158 : vector<8x8x128xf32>
    %160 = arith.addf %150, %159 : vector<8x8x128xf32>
    %161 = vector.extract_strided_slice %16 {offsets = [2, 0, 0], sizes = [8, 8, 128], strides = [1, 1, 1]} : vector<14x8x128xf32> to vector<8x8x128xf32>
    %162 = vector.shape_cast %41 : vector<1x128xf32> to vector<1x1x128xf32>
    %163 = vector.broadcast %162 : vector<1x1x128xf32> to vector<8x8x128xf32>
    %164 = arith.mulf %161, %163 : vector<8x8x128xf32>
    %165 = arith.addf %155, %164 : vector<8x8x128xf32>
    %166 = vector.extract_strided_slice %19 {offsets = [2, 0, 0], sizes = [8, 8, 128], strides = [1, 1, 1]} : vector<14x8x128xf32> to vector<8x8x128xf32>
    %167 = vector.shape_cast %42 : vector<1x128xf32> to vector<1x1x128xf32>
    %168 = vector.broadcast %167 : vector<1x1x128xf32> to vector<8x8x128xf32>
    %169 = arith.mulf %166, %168 : vector<8x8x128xf32>
    %170 = arith.addf %160, %169 : vector<8x8x128xf32>
    %171 = vector.extract_strided_slice %22 {offsets = [2, 0, 0], sizes = [8, 8, 128], strides = [1, 1, 1]} : vector<14x8x128xf32> to vector<8x8x128xf32>
    %172 = vector.shape_cast %43 : vector<1x128xf32> to vector<1x1x128xf32>
    %173 = vector.broadcast %172 : vector<1x1x128xf32> to vector<8x8x128xf32>
    %174 = arith.mulf %171, %173 : vector<8x8x128xf32>
    %175 = arith.addf %165, %174 : vector<8x8x128xf32>
    %176 = vector.extract_strided_slice %4 {offsets = [3, 0, 0], sizes = [8, 8, 128], strides = [1, 1, 1]} : vector<14x8x128xf32> to vector<8x8x128xf32>
    %177 = vector.shape_cast %44 : vector<1x128xf32> to vector<1x1x128xf32>
    %178 = vector.broadcast %177 : vector<1x1x128xf32> to vector<8x8x128xf32>
    %179 = arith.mulf %176, %178 : vector<8x8x128xf32>
    %180 = arith.addf %170, %179 : vector<8x8x128xf32>
    %181 = vector.extract_strided_slice %7 {offsets = [3, 0, 0], sizes = [8, 8, 128], strides = [1, 1, 1]} : vector<14x8x128xf32> to vector<8x8x128xf32>
    %182 = vector.shape_cast %45 : vector<1x128xf32> to vector<1x1x128xf32>
    %183 = vector.broadcast %182 : vector<1x1x128xf32> to vector<8x8x128xf32>
    %184 = arith.mulf %181, %183 : vector<8x8x128xf32>
    %185 = arith.addf %175, %184 : vector<8x8x128xf32>
    %186 = vector.extract_strided_slice %10 {offsets = [3, 0, 0], sizes = [8, 8, 128], strides = [1, 1, 1]} : vector<14x8x128xf32> to vector<8x8x128xf32>
    %187 = vector.shape_cast %46 : vector<1x128xf32> to vector<1x1x128xf32>
    %188 = vector.broadcast %187 : vector<1x1x128xf32> to vector<8x8x128xf32>
    %189 = arith.mulf %186, %188 : vector<8x8x128xf32>
    %190 = arith.addf %180, %189 : vector<8x8x128xf32>
    %191 = vector.extract_strided_slice %13 {offsets = [3, 0, 0], sizes = [8, 8, 128], strides = [1, 1, 1]} : vector<14x8x128xf32> to vector<8x8x128xf32>
    %192 = vector.shape_cast %47 : vector<1x128xf32> to vector<1x1x128xf32>
    %193 = vector.broadcast %192 : vector<1x1x128xf32> to vector<8x8x128xf32>
    %194 = arith.mulf %191, %193 : vector<8x8x128xf32>
    %195 = arith.addf %185, %194 : vector<8x8x128xf32>
    %196 = vector.extract_strided_slice %16 {offsets = [3, 0, 0], sizes = [8, 8, 128], strides = [1, 1, 1]} : vector<14x8x128xf32> to vector<8x8x128xf32>
    %197 = vector.shape_cast %48 : vector<1x128xf32> to vector<1x1x128xf32>
    %198 = vector.broadcast %197 : vector<1x1x128xf32> to vector<8x8x128xf32>
    %199 = arith.mulf %196, %198 : vector<8x8x128xf32>
    %200 = arith.addf %190, %199 : vector<8x8x128xf32>
    %201 = vector.extract_strided_slice %19 {offsets = [3, 0, 0], sizes = [8, 8, 128], strides = [1, 1, 1]} : vector<14x8x128xf32> to vector<8x8x128xf32>
    %202 = vector.shape_cast %49 : vector<1x128xf32> to vector<1x1x128xf32>
    %203 = vector.broadcast %202 : vector<1x1x128xf32> to vector<8x8x128xf32>
    %204 = arith.mulf %201, %203 : vector<8x8x128xf32>
    %205 = arith.addf %195, %204 : vector<8x8x128xf32>
    %206 = vector.extract_strided_slice %22 {offsets = [3, 0, 0], sizes = [8, 8, 128], strides = [1, 1, 1]} : vector<14x8x128xf32> to vector<8x8x128xf32>
    %207 = vector.shape_cast %50 : vector<1x128xf32> to vector<1x1x128xf32>
    %208 = vector.broadcast %207 : vector<1x1x128xf32> to vector<8x8x128xf32>
    %209 = arith.mulf %206, %208 : vector<8x8x128xf32>
    %210 = arith.addf %200, %209 : vector<8x8x128xf32>
    %211 = vector.extract_strided_slice %4 {offsets = [4, 0, 0], sizes = [8, 8, 128], strides = [1, 1, 1]} : vector<14x8x128xf32> to vector<8x8x128xf32>
    %212 = vector.shape_cast %51 : vector<1x128xf32> to vector<1x1x128xf32>
    %213 = vector.broadcast %212 : vector<1x1x128xf32> to vector<8x8x128xf32>
    %214 = arith.mulf %211, %213 : vector<8x8x128xf32>
    %215 = arith.addf %205, %214 : vector<8x8x128xf32>
    %216 = vector.extract_strided_slice %7 {offsets = [4, 0, 0], sizes = [8, 8, 128], strides = [1, 1, 1]} : vector<14x8x128xf32> to vector<8x8x128xf32>
    %217 = vector.shape_cast %52 : vector<1x128xf32> to vector<1x1x128xf32>
    %218 = vector.broadcast %217 : vector<1x1x128xf32> to vector<8x8x128xf32>
    %219 = arith.mulf %216, %218 : vector<8x8x128xf32>
    %220 = arith.addf %210, %219 : vector<8x8x128xf32>
    %221 = vector.extract_strided_slice %10 {offsets = [4, 0, 0], sizes = [8, 8, 128], strides = [1, 1, 1]} : vector<14x8x128xf32> to vector<8x8x128xf32>
    %222 = vector.shape_cast %53 : vector<1x128xf32> to vector<1x1x128xf32>
    %223 = vector.broadcast %222 : vector<1x1x128xf32> to vector<8x8x128xf32>
    %224 = arith.mulf %221, %223 : vector<8x8x128xf32>
    %225 = arith.addf %215, %224 : vector<8x8x128xf32>
    %226 = vector.extract_strided_slice %13 {offsets = [4, 0, 0], sizes = [8, 8, 128], strides = [1, 1, 1]} : vector<14x8x128xf32> to vector<8x8x128xf32>
    %227 = vector.shape_cast %54 : vector<1x128xf32> to vector<1x1x128xf32>
    %228 = vector.broadcast %227 : vector<1x1x128xf32> to vector<8x8x128xf32>
    %229 = arith.mulf %226, %228 : vector<8x8x128xf32>
    %230 = arith.addf %220, %229 : vector<8x8x128xf32>
    %231 = vector.extract_strided_slice %16 {offsets = [4, 0, 0], sizes = [8, 8, 128], strides = [1, 1, 1]} : vector<14x8x128xf32> to vector<8x8x128xf32>
    %232 = vector.shape_cast %55 : vector<1x128xf32> to vector<1x1x128xf32>
    %233 = vector.broadcast %232 : vector<1x1x128xf32> to vector<8x8x128xf32>
    %234 = arith.mulf %231, %233 : vector<8x8x128xf32>
    %235 = arith.addf %225, %234 : vector<8x8x128xf32>
    %236 = vector.extract_strided_slice %19 {offsets = [4, 0, 0], sizes = [8, 8, 128], strides = [1, 1, 1]} : vector<14x8x128xf32> to vector<8x8x128xf32>
    %237 = vector.shape_cast %56 : vector<1x128xf32> to vector<1x1x128xf32>
    %238 = vector.broadcast %237 : vector<1x1x128xf32> to vector<8x8x128xf32>
    %239 = arith.mulf %236, %238 : vector<8x8x128xf32>
    %240 = arith.addf %230, %239 : vector<8x8x128xf32>
    %241 = vector.extract_strided_slice %22 {offsets = [4, 0, 0], sizes = [8, 8, 128], strides = [1, 1, 1]} : vector<14x8x128xf32> to vector<8x8x128xf32>
    %242 = vector.shape_cast %57 : vector<1x128xf32> to vector<1x1x128xf32>
    %243 = vector.broadcast %242 : vector<1x1x128xf32> to vector<8x8x128xf32>
    %244 = arith.mulf %241, %243 : vector<8x8x128xf32>
    %245 = arith.addf %235, %244 : vector<8x8x128xf32>
    %246 = vector.extract_strided_slice %4 {offsets = [5, 0, 0], sizes = [8, 8, 128], strides = [1, 1, 1]} : vector<14x8x128xf32> to vector<8x8x128xf32>
    %247 = vector.shape_cast %58 : vector<1x128xf32> to vector<1x1x128xf32>
    %248 = vector.broadcast %247 : vector<1x1x128xf32> to vector<8x8x128xf32>
    %249 = arith.mulf %246, %248 : vector<8x8x128xf32>
    %250 = arith.addf %240, %249 : vector<8x8x128xf32>
    %251 = vector.extract_strided_slice %7 {offsets = [5, 0, 0], sizes = [8, 8, 128], strides = [1, 1, 1]} : vector<14x8x128xf32> to vector<8x8x128xf32>
    %252 = vector.shape_cast %59 : vector<1x128xf32> to vector<1x1x128xf32>
    %253 = vector.broadcast %252 : vector<1x1x128xf32> to vector<8x8x128xf32>
    %254 = arith.mulf %251, %253 : vector<8x8x128xf32>
    %255 = arith.addf %245, %254 : vector<8x8x128xf32>
    %256 = vector.extract_strided_slice %10 {offsets = [5, 0, 0], sizes = [8, 8, 128], strides = [1, 1, 1]} : vector<14x8x128xf32> to vector<8x8x128xf32>
    %257 = vector.shape_cast %60 : vector<1x128xf32> to vector<1x1x128xf32>
    %258 = vector.broadcast %257 : vector<1x1x128xf32> to vector<8x8x128xf32>
    %259 = arith.mulf %256, %258 : vector<8x8x128xf32>
    %260 = arith.addf %250, %259 : vector<8x8x128xf32>
    %261 = vector.extract_strided_slice %13 {offsets = [5, 0, 0], sizes = [8, 8, 128], strides = [1, 1, 1]} : vector<14x8x128xf32> to vector<8x8x128xf32>
    %262 = vector.shape_cast %61 : vector<1x128xf32> to vector<1x1x128xf32>
    %263 = vector.broadcast %262 : vector<1x1x128xf32> to vector<8x8x128xf32>
    %264 = arith.mulf %261, %263 : vector<8x8x128xf32>
    %265 = arith.addf %255, %264 : vector<8x8x128xf32>
    %266 = vector.extract_strided_slice %16 {offsets = [5, 0, 0], sizes = [8, 8, 128], strides = [1, 1, 1]} : vector<14x8x128xf32> to vector<8x8x128xf32>
    %267 = vector.shape_cast %62 : vector<1x128xf32> to vector<1x1x128xf32>
    %268 = vector.broadcast %267 : vector<1x1x128xf32> to vector<8x8x128xf32>
    %269 = arith.mulf %266, %268 : vector<8x8x128xf32>
    %270 = arith.addf %260, %269 : vector<8x8x128xf32>
    %271 = vector.extract_strided_slice %19 {offsets = [5, 0, 0], sizes = [8, 8, 128], strides = [1, 1, 1]} : vector<14x8x128xf32> to vector<8x8x128xf32>
    %272 = vector.shape_cast %63 : vector<1x128xf32> to vector<1x1x128xf32>
    %273 = vector.broadcast %272 : vector<1x1x128xf32> to vector<8x8x128xf32>
    %274 = arith.mulf %271, %273 : vector<8x8x128xf32>
    %275 = arith.addf %265, %274 : vector<8x8x128xf32>
    %276 = vector.extract_strided_slice %22 {offsets = [5, 0, 0], sizes = [8, 8, 128], strides = [1, 1, 1]} : vector<14x8x128xf32> to vector<8x8x128xf32>
    %277 = vector.shape_cast %64 : vector<1x128xf32> to vector<1x1x128xf32>
    %278 = vector.broadcast %277 : vector<1x1x128xf32> to vector<8x8x128xf32>
    %279 = arith.mulf %276, %278 : vector<8x8x128xf32>
    %280 = arith.addf %270, %279 : vector<8x8x128xf32>
    %281 = vector.extract_strided_slice %4 {offsets = [6, 0, 0], sizes = [8, 8, 128], strides = [1, 1, 1]} : vector<14x8x128xf32> to vector<8x8x128xf32>
    %282 = vector.shape_cast %65 : vector<1x128xf32> to vector<1x1x128xf32>
    %283 = vector.broadcast %282 : vector<1x1x128xf32> to vector<8x8x128xf32>
    %284 = arith.mulf %281, %283 : vector<8x8x128xf32>
    %285 = arith.addf %275, %284 : vector<8x8x128xf32>
    %286 = vector.extract_strided_slice %7 {offsets = [6, 0, 0], sizes = [8, 8, 128], strides = [1, 1, 1]} : vector<14x8x128xf32> to vector<8x8x128xf32>
    %287 = vector.shape_cast %66 : vector<1x128xf32> to vector<1x1x128xf32>
    %288 = vector.broadcast %287 : vector<1x1x128xf32> to vector<8x8x128xf32>
    %289 = arith.mulf %286, %288 : vector<8x8x128xf32>
    %290 = arith.addf %280, %289 : vector<8x8x128xf32>
    %291 = vector.extract_strided_slice %10 {offsets = [6, 0, 0], sizes = [8, 8, 128], strides = [1, 1, 1]} : vector<14x8x128xf32> to vector<8x8x128xf32>
    %292 = vector.shape_cast %67 : vector<1x128xf32> to vector<1x1x128xf32>
    %293 = vector.broadcast %292 : vector<1x1x128xf32> to vector<8x8x128xf32>
    %294 = arith.mulf %291, %293 : vector<8x8x128xf32>
    %295 = arith.addf %285, %294 : vector<8x8x128xf32>
    %296 = vector.extract_strided_slice %13 {offsets = [6, 0, 0], sizes = [8, 8, 128], strides = [1, 1, 1]} : vector<14x8x128xf32> to vector<8x8x128xf32>
    %297 = vector.shape_cast %68 : vector<1x128xf32> to vector<1x1x128xf32>
    %298 = vector.broadcast %297 : vector<1x1x128xf32> to vector<8x8x128xf32>
    %299 = arith.mulf %296, %298 : vector<8x8x128xf32>
    %300 = arith.addf %290, %299 : vector<8x8x128xf32>
    %301 = vector.extract_strided_slice %16 {offsets = [6, 0, 0], sizes = [8, 8, 128], strides = [1, 1, 1]} : vector<14x8x128xf32> to vector<8x8x128xf32>
    %302 = vector.shape_cast %69 : vector<1x128xf32> to vector<1x1x128xf32>
    %303 = vector.broadcast %302 : vector<1x1x128xf32> to vector<8x8x128xf32>
    %304 = arith.mulf %301, %303 : vector<8x8x128xf32>
    %305 = arith.addf %295, %304 : vector<8x8x128xf32>
    %306 = vector.extract_strided_slice %19 {offsets = [6, 0, 0], sizes = [8, 8, 128], strides = [1, 1, 1]} : vector<14x8x128xf32> to vector<8x8x128xf32>
    %307 = vector.shape_cast %70 : vector<1x128xf32> to vector<1x1x128xf32>
    %308 = vector.broadcast %307 : vector<1x1x128xf32> to vector<8x8x128xf32>
    %309 = arith.mulf %306, %308 : vector<8x8x128xf32>
    %310 = arith.addf %300, %309 : vector<8x8x128xf32>
    %311 = vector.extract_strided_slice %22 {offsets = [6, 0, 0], sizes = [8, 8, 128], strides = [1, 1, 1]} : vector<14x8x128xf32> to vector<8x8x128xf32>
    %312 = vector.shape_cast %71 : vector<1x128xf32> to vector<1x1x128xf32>
    %313 = vector.broadcast %312 : vector<1x1x128xf32> to vector<8x8x128xf32>
    %314 = arith.mulf %311, %313 : vector<8x8x128xf32>
    %315 = arith.addf %305, %314 : vector<8x8x128xf32>
    %316 = arith.addf %315, %310 : vector<8x8x128xf32>
    %317 = vector.shape_cast %72 : vector<1x128xf32> to vector<1x1x128xf32>
    %318 = vector.broadcast %317 : vector<1x1x128xf32> to vector<8x8x128xf32>
    %319 = arith.addf %316, %318 : vector<8x8x128xf32>
    %320 = vector.shape_cast %319 : vector<8x8x128xf32> to vector<1x8x8x128xf32>
    %c0_72 = arith.constant 0 : index
    %c0_73 = arith.constant 0 : index
    %c0_74 = arith.constant 0 : index
    %c0_75 = arith.constant 0 : index
    %321 = vector.load %arg5[%c0_72, %c0_73, %c0_74, %c0_75] : memref<1x8x8x128xf32, #tpu.memory_space<vmem>>, vector<1x8x8x128xf32>
    tpu.vector_store %arg5[%c0_72, %c0_73, %c0_74, %c0_75], %320 {strides = array<i32>} : memref<1x8x8x128xf32, #tpu.memory_space<vmem>>, vector<1x8x8x128xf32>,
    return
  }
  func.func @transform_0(%arg0: i32, %arg1: i32) -> (i32, i32, i32, i32) {
    %c0_i32 = arith.constant 0 : i32
    %c0_i32_0 = arith.constant 0 : i32
    %c0_i32_1 = arith.constant 0 : i32
    %c0_i32_2 = arith.constant 0 : i32
    return %arg0, %c0_i32, %c0_i32_0, %c0_i32_1 : i32, i32, i32, i32
  }
  func.func @transform_1(%arg0: i32, %arg1: i32) -> (i32, i32) {
    %c0_i32 = arith.constant 0 : i32
    %c0_i32_0 = arith.constant 0 : i32
    %c0_i32_1 = arith.constant 0 : i32
    return %c0_i32, %c0_i32_0 : i32, i32
  }
  func.func @transform_2(%arg0: i32, %arg1: i32) -> (i32, i32) {
    %c0_i32 = arith.constant 0 : i32
    %c0_i32_0 = arith.constant 0 : i32
    %c0_i32_1 = arith.constant 0 : i32
    return %c0_i32, %c0_i32_0 : i32, i32
  }
  func.func @transform_3(%arg0: i32, %arg1: i32) -> (i32, i32, i32, i32) {
    %c0_i32 = arith.constant 0 : i32
    %c0_i32_0 = arith.constant 0 : i32
    %c0_i32_1 = arith.constant 0 : i32
    return %arg0, %arg1, %c0_i32, %c0_i32_0 : i32, i32, i32, i32
  }
}

</mosaic_0001>

<llo_original>
// kernel: tpu_custom_call.1
$region0: #{tpu_custom_call.1}
  #allocation0 [shape = 'u32[]', space=smem, size = 0x4, offset = 0x4, fixed_abs, tag = 'smem constant byte address 0x4 - core index']
  #allocation1 [shape = 'u32[72,128]{1,0:T(1,128)}', space=vmem, size = 0x9000, scoped, tag = 'internal scratch']
  %s0 = inlined_call_operand.vmem [shape: f32[2,14,14,128], index: 0, kind: input, shape index: {}]
  %s1 = inlined_call_operand.vmem [shape: f32[49,128], index: 1, kind: input, shape index: {}]
  %s2 = inlined_call_operand.vmem [shape: f32[1,128], index: 2, kind: input, shape index: {}]
  %s3 = inlined_call_operand.hbm [shape: f32[2,8,8,128], index: 3, kind: output, shape index: {}]
  %s4 = sld [smem:[#allocation0]]
  $region45: #{tpu_custom_call.1} parent=0
    _
  %s6 = ssub.s32 1, %s4
  %s7 = scalar_select 0, %s6, %s4
  $region1: #{tpu_custom_call.1} parent=0
    #allocation2 [shape = 'u8[65536]{0}', space=vmem, size = 0x10000, scoped, tag = 'output window, operand 0']
    #allocation3 [shape = 's32[2]{0}', space=sflag, size = 0x8, scoped, tag = 'scoped memory for tpu_custom_call.1']
    %8 = vsyncpa [#allocation3], 0
    %s9 = scalar_lea.sflag [#allocation3], 1
    %10 = vsyncpa %s9, 0
    loop: start=0, step=1, limit=4
    $region2: #{tpu_custom_call.1} parent=1 // loop_pre_header
      _
    $region3: #{tpu_custom_call.1} parent=1 // loop_header
      %s12 = sphi 0, %s16
      %p13 = scmp.ge.s32.totalorder %s12, 4
      %s19 = sphi 0, %s31
      %s20 = sphi 0, %s27
      %s21 = sphi 0, %s19
      %s22 = sphi 0, %s20
      %s23 = sphi 0, %s21
      %s24 = sphi 0, %s22
      %s34 = sphi 0, %s36
      %s37 = sphi 0, %s34
      %s38 = sphi 0, %s37
      %s54 = sphi 0, %s38
      %s58 = sphi 0, %s58
      %s60 = sphi 0, %s58
      %s61 = sphi 0, %s60
      %s75 = sphi 0, %s61
      %s79 = sphi 0, %s79
      %s81 = sphi 0, %s79
      %s82 = sphi 0, %s81
      %s96 = sphi 0, %s82
      %s104 = sphi 0, %s106
      %s107 = sphi 0, %s104
      %s108 = sphi 0, %s107
      %s124 = sphi 0, %s108
    $region4: #{tpu_custom_call.1} parent=1 // loop_header_branch
      %15 = sbr.rel (%p13) target = $region8
    $region5: #{tpu_custom_call.1} parent=1 // loop_body
      %s17 = ssub.s32 %s12, 1
      %s18 = ssub.s32 %s12, 2
      %s25 = sadd.s32 1, %s20
      %p26 = scmp.ge.s32.totalorder %s25, 1
      %s27 = scalar_select %p26, 0, %s25
      %s28 = sadd.s32 1, %s19
      %s29 = scalar_select %p26, %s28, %s19
      %p30 = scmp.ge.s32.totalorder %s29, 2
      %s31 = scalar_select %p30, 0, %s29
      %s32 = ssub.s32 %s19, %s31
      %p33 = scmp.eq.s32.totalorder %s32, 0
      %s35 = sadd.s32 %s34, 1
      %s36 = scalar_select %p33, %s34, %s35
      %p39 = pneg %p33
      %p40 = scmp.eq.s32.totalorder %s12, 1
      %p41 = por %p39, %p40
      %p42 = scmp.ne.s32.totalorder %s34, %s37
      %p43 = scmp.eq.s32.totalorder %s12, 0
      %p44 = por %p42, %p43
      %p45 = scmp.ne.s32.totalorder %s34, %s37
      %p46 = scmp.eq.s32.totalorder %s17, 1
      %p47 = por %p45, %p46
      %p48 = scmp.ne.s32.totalorder %s37, %s38
      %p49 = scmp.eq.s32.totalorder %s17, 0
      %p50 = por %p48, %p49
      %p51 = scmp.ne.s32.totalorder %s37, %s38
      %p52 = scmp.eq.s32.totalorder %s18, 1
      %p53 = por %p51, %p52
      %p55 = scmp.ne.s32.totalorder %s38, %s54
      %p56 = scmp.eq.s32.totalorder %s18, 0
      %p57 = por %p55, %p56
      %s59 = sadd.s32 %s58, 1
      %p62 = scmp.eq.s32.totalorder %s12, 1
      %p63 = scmp.ne.s32.totalorder %s58, %s60
      %p64 = scmp.eq.s32.totalorder %s12, 0
      %p65 = por %p63, %p64
      %p66 = scmp.ne.s32.totalorder %s58, %s60
      %p67 = scmp.eq.s32.totalorder %s17, 1
      %p68 = por %p66, %p67
      %p69 = scmp.ne.s32.totalorder %s60, %s61
      %p70 = scmp.eq.s32.totalorder %s17, 0
      %p71 = por %p69, %p70
      %p72 = scmp.ne.s32.totalorder %s60, %s61
      %p73 = scmp.eq.s32.totalorder %s18, 1
      %p74 = por %p72, %p73
      %p76 = scmp.ne.s32.totalorder %s61, %s75
      %p77 = scmp.eq.s32.totalorder %s18, 0
      %p78 = por %p76, %p77
      %s80 = sadd.s32 %s79, 1
      %p83 = scmp.eq.s32.totalorder %s12, 1
      %p84 = scmp.ne.s32.totalorder %s79, %s81
      %p85 = scmp.eq.s32.totalorder %s12, 0
      %p86 = por %p84, %p85
      %p87 = scmp.ne.s32.totalorder %s79, %s81
      %p88 = scmp.eq.s32.totalorder %s17, 1
      %p89 = por %p87, %p88
      %p90 = scmp.ne.s32.totalorder %s81, %s82
      %p91 = scmp.eq.s32.totalorder %s17, 0
      %p92 = por %p90, %p91
      %p93 = scmp.ne.s32.totalorder %s81, %s82
      %p94 = scmp.eq.s32.totalorder %s18, 1
      %p95 = por %p93, %p94
      %p97 = scmp.ne.s32.totalorder %s82, %s96
      %p98 = scmp.eq.s32.totalorder %s18, 0
      %p99 = por %p97, %p98
      %s100 = ssub.s32 %s19, %s31
      %s101 = ssub.s32 %s20, %s27
      %s102 = sor.u32 %s100, %s101
      %p103 = scmp.eq.s32.totalorder %s102, 0
      %s105 = sadd.s32 %s104, 1
      %s106 = scalar_select %p103, %s104, %s105
      %p109 = pneg %p103
      %p110 = scmp.eq.s32.totalorder %s12, 1
      %p111 = por %p109, %p110
      %p112 = scmp.ne.s32.totalorder %s104, %s107
      %p113 = scmp.eq.s32.totalorder %s12, 0
      %p114 = por %p112, %p113
      %p115 = scmp.ne.s32.totalorder %s104, %s107
      %p116 = scmp.eq.s32.totalorder %s17, 1
      %p117 = por %p115, %p116
      %p118 = scmp.ne.s32.totalorder %s107, %s108
      %p119 = scmp.eq.s32.totalorder %s17, 0
      %p120 = por %p118, %p119
      %p121 = scmp.ne.s32.totalorder %s107, %s108
      %p122 = scmp.eq.s32.totalorder %s18, 1
      %p123 = por %p121, %p122
      %p125 = scmp.ne.s32.totalorder %s108, %s124
      %p126 = scmp.eq.s32.totalorder %s18, 0
      %p127 = por %p125, %p126
      %p128 = scmp.le.s32.totalorder 1, %s12
      %p129 = scmp.lt.s32.totalorder %s12, 3
      %p130 = pnand %p128, %p129
      %p131 = pneg %p130
      // Predicated region
      $region9: #{tpu_custom_call.1} parent=5 // pred_check
        _
      $region10: #{tpu_custom_call.1} parent=5 // pred_check_branch
        %133 = sbr.rel (%p130) target = $region12
      $region11: #{tpu_custom_call.1} parent=5 // pred_region
        %s134 = ssub.s32 %s12, 1
        // Predicated region
        $region13: #{tpu_custom_call.1} parent=11 // pred_check
          %p135 = pneg %p71
        $region14: #{tpu_custom_call.1} parent=11 // pred_check_branch
          %137 = sbr.rel (%p135) target = $region16
        $region15: #{tpu_custom_call.1} parent=11 // pred_region
          _
        $region16: #{tpu_custom_call.1} parent=11 // pred_fallthru
          _
        // Predicated region
        $region17: #{tpu_custom_call.1} parent=11 // pred_check
          %p138 = pneg %p92
        $region18: #{tpu_custom_call.1} parent=11 // pred_check_branch
          %140 = sbr.rel (%p138) target = $region20
        $region19: #{tpu_custom_call.1} parent=11 // pred_region
          _
        $region20: #{tpu_custom_call.1} parent=11 // pred_fallthru
          _
      $region12: #{tpu_custom_call.1} parent=5 // pred_fallthru
        _
      %p141 = scmp.lt.s32.totalorder %s12, 2
      // Predicated region
      $region21: #{tpu_custom_call.1} parent=5 // pred_check
        %p142 = pneg %p141
      $region22: #{tpu_custom_call.1} parent=5 // pred_check_branch
        %144 = sbr.rel (%p142) target = $region24
      $region23: #{tpu_custom_call.1} parent=5 // pred_region
        // Predicated region
        $region25: #{tpu_custom_call.1} parent=23 // pred_check
          %p145 = pneg %p44
        $region26: #{tpu_custom_call.1} parent=23 // pred_check_branch
          %147 = sbr.rel (%p145) target = $region28
        $region27: #{tpu_custom_call.1} parent=23 // pred_region
          %p148 = scmp.lt.s32.totalorder %s19, 1
          %s149 = scalar_select %p148, %s19, 1
          %s150 = smul.addr %s149, 28
          %s151 = smul.addr %s150, 8
          %s152 = scalar_lea.vmem %s0, %s151
        $region28: #{tpu_custom_call.1} parent=23 // pred_fallthru
          _
      $region24: #{tpu_custom_call.1} parent=5 // pred_fallthru
        _
      %p153 = scmp.le.s32.totalorder 1, %s12
      %p154 = scmp.lt.s32.totalorder %s12, 3
      %p155 = pnand %p153, %p154
      %p156 = pneg %p155
      // Predicated region
      $region29: #{tpu_custom_call.1} parent=5 // pred_check
        _
      $region30: #{tpu_custom_call.1} parent=5 // pred_check_branch
        %158 = sbr.rel (%p155) target = $region32
      $region31: #{tpu_custom_call.1} parent=5 // pred_region
        %s159 = ssub.s32 %s12, 1
        %p160 = scmp.lt.s32.totalorder %s21, 1
        %s161 = scalar_select %p160, %s21, 1
        %s162 = smul.addr %s161, 28
        %s163 = smul.addr %s162, 8
        %s164 = scalar_lea.vmem %s0, %s163
        %p165 = pneg %p50
        %p166 = pneg %p47
        %p167 = pneg %p71
        %p168 = pneg %p68
        %p169 = pneg %p92
        %p170 = pneg %p89
        %p171 = pneg %p120
        %p172 = pneg %p117
        %s173 = sand.u32 %s107, 1
        %s174 = scalar_lea.sflag [#allocation3], %s173
        %s175 = sand.u32 %s107, 1
        %s176 = smul.addr %s175, 64
        %s177 = scalar_lea.vmem [#allocation2], %s176
        %p178 = scmp.lt.s32.totalorder %s21, 1
        %s179 = scalar_select %p178, %s21, 1
        %s180 = smul.addr %s179, 28
        %s181 = smul.addr %s180, 8
        %s182 = scalar_lea.vmem %s0, %s181
        %s183 = smul.u32 8, %s22
        %s184 = smul.u32 %s22, 8
        %s185 = smul.u32 %s184, 16
        %s186 = scalar_lea.vmem %s182, %s185
        %v187 = vld [vmem:[%s186] sm:$0xff]
        %v188 = vld [vmem:[%s186 + $0x10] sm:$0xff]
        %v189 = vld [vmem:[%s186 + $0x20] sm:$0xff]
        %v190 = vld [vmem:[%s186 + $0x30] sm:$0xff]
        %v191 = vld [vmem:[%s186 + $0x40] sm:$0xff]
        %v192 = vld [vmem:[%s186 + $0x50] sm:$0xff]
        %v193 = vld [vmem:[%s186 + $0x60] sm:$0xff]
        %v194 = vld [vmem:[%s186 + $0x70] sm:$0xff]
        %v195 = vld [vmem:[%s186 + $0x80] sm:$0xff]
        %v196 = vld [vmem:[%s186 + $0x90] sm:$0xff]
        %v197 = vld [vmem:[%s186 + $0xa0] sm:$0xff]
        %v198 = vld [vmem:[%s186 + $0xb0] sm:$0xff]
        %v199 = vld [vmem:[%s186 + $0xc0] sm:$0xff]
        %v200 = vld [vmem:[%s186 + $0xd0] sm:$0xff]
        %v201 = vld [vmem:[%s186 + $0x1] sm:$0xff]
        %v202 = vld [vmem:[%s186 + $0x11] sm:$0xff]
        %v203 = vld [vmem:[%s186 + $0x21] sm:$0xff]
        %v204 = vld [vmem:[%s186 + $0x31] sm:$0xff]
        %v205 = vld [vmem:[%s186 + $0x41] sm:$0xff]
        %v206 = vld [vmem:[%s186 + $0x51] sm:$0xff]
        %v207 = vld [vmem:[%s186 + $0x61] sm:$0xff]
        %v208 = vld [vmem:[%s186 + $0x71] sm:$0xff]
        %v209 = vld [vmem:[%s186 + $0x81] sm:$0xff]
        %v210 = vld [vmem:[%s186 + $0x91] sm:$0xff]
        %v211 = vld [vmem:[%s186 + $0xa1] sm:$0xff]
        %v212 = vld [vmem:[%s186 + $0xb1] sm:$0xff]
        %v213 = vld [vmem:[%s186 + $0xc1] sm:$0xff]
        %v214 = vld [vmem:[%s186 + $0xd1] sm:$0xff]
        %v215 = vld [vmem:[%s186 + $0x2] sm:$0xff]
        %v216 = vld [vmem:[%s186 + $0x12] sm:$0xff]
        %v217 = vld [vmem:[%s186 + $0x22] sm:$0xff]
        %v218 = vld [vmem:[%s186 + $0x32] sm:$0xff]
        %v219 = vld [vmem:[%s186 + $0x42] sm:$0xff]
        %v220 = vld [vmem:[%s186 + $0x52] sm:$0xff]
        %v221 = vld [vmem:[%s186 + $0x62] sm:$0xff]
        %v222 = vld [vmem:[%s186 + $0x72] sm:$0xff]
        %v223 = vld [vmem:[%s186 + $0x82] sm:$0xff]
        %v224 = vld [vmem:[%s186 + $0x92] sm:$0xff]
        %v225 = vld [vmem:[%s186 + $0xa2] sm:$0xff]
        %v226 = vld [vmem:[%s186 + $0xb2] sm:$0xff]
        %v227 = vld [vmem:[%s186 + $0xc2] sm:$0xff]
        %v228 = vld [vmem:[%s186 + $0xd2] sm:$0xff]
        %v229 = vld [vmem:[%s186 + $0x3] sm:$0xff]
        %v230 = vld [vmem:[%s186 + $0x13] sm:$0xff]
        %v231 = vld [vmem:[%s186 + $0x23] sm:$0xff]
        %v232 = vld [vmem:[%s186 + $0x33] sm:$0xff]
        %v233 = vld [vmem:[%s186 + $0x43] sm:$0xff]
        %v234 = vld [vmem:[%s186 + $0x53] sm:$0xff]
        %v235 = vld [vmem:[%s186 + $0x63] sm:$0xff]
        %v236 = vld [vmem:[%s186 + $0x73] sm:$0xff]
        %v237 = vld [vmem:[%s186 + $0x83] sm:$0xff]
        %v238 = vld [vmem:[%s186 + $0x93] sm:$0xff]
        %v239 = vld [vmem:[%s186 + $0xa3] sm:$0xff]
        %v240 = vld [vmem:[%s186 + $0xb3] sm:$0xff]
        %v241 = vld [vmem:[%s186 + $0xc3] sm:$0xff]
        %v242 = vld [vmem:[%s186 + $0xd3] sm:$0xff]
        %v243 = vld [vmem:[%s186 + $0x4] sm:$0xff]
        %v244 = vld [vmem:[%s186 + $0x14] sm:$0xff]
        %v245 = vld [vmem:[%s186 + $0x24] sm:$0xff]
        %v246 = vld [vmem:[%s186 + $0x34] sm:$0xff]
        %v247 = vld [vmem:[%s186 + $0x44] sm:$0xff]
        %v248 = vld [vmem:[%s186 + $0x54] sm:$0xff]
        %v249 = vld [vmem:[%s186 + $0x64] sm:$0xff]
        %v250 = vld [vmem:[%s186 + $0x74] sm:$0xff]
        %v251 = vld [vmem:[%s186 + $0x84] sm:$0xff]
        %v252 = vld [vmem:[%s186 + $0x94] sm:$0xff]
        %v253 = vld [vmem:[%s186 + $0xa4] sm:$0xff]
        %v254 = vld [vmem:[%s186 + $0xb4] sm:$0xff]
        %v255 = vld [vmem:[%s186 + $0xc4] sm:$0xff]
        %v256 = vld [vmem:[%s186 + $0xd4] sm:$0xff]
        %v257 = vld [vmem:[%s186 + $0x5] sm:$0xff]
        %v258 = vld [vmem:[%s186 + $0x15] sm:$0xff]
        %v259 = vld [vmem:[%s186 + $0x25] sm:$0xff]
        %v260 = vld [vmem:[%s186 + $0x35] sm:$0xff]
        %v261 = vld [vmem:[%s186 + $0x45] sm:$0xff]
        %v262 = vld [vmem:[%s186 + $0x55] sm:$0xff]
        %v263 = vld [vmem:[%s186 + $0x65] sm:$0xff]
        %v264 = vld [vmem:[%s186 + $0x75] sm:$0xff]
        %v265 = vld [vmem:[%s186 + $0x85] sm:$0xff]
        %v266 = vld [vmem:[%s186 + $0x95] sm:$0xff]
        %v267 = vld [vmem:[%s186 + $0xa5] sm:$0xff]
        %v268 = vld [vmem:[%s186 + $0xb5] sm:$0xff]
        %v269 = vld [vmem:[%s186 + $0xc5] sm:$0xff]
        %v270 = vld [vmem:[%s186 + $0xd5] sm:$0xff]
        %v271 = vld [vmem:[%s186 + $0x6] sm:$0xff]
        %v272 = vld [vmem:[%s186 + $0x16] sm:$0xff]
        %v273 = vld [vmem:[%s186 + $0x26] sm:$0xff]
        %v274 = vld [vmem:[%s186 + $0x36] sm:$0xff]
        %v275 = vld [vmem:[%s186 + $0x46] sm:$0xff]
        %v276 = vld [vmem:[%s186 + $0x56] sm:$0xff]
        %v277 = vld [vmem:[%s186 + $0x66] sm:$0xff]
        %v278 = vld [vmem:[%s186 + $0x76] sm:$0xff]
        %v279 = vld [vmem:[%s186 + $0x86] sm:$0xff]
        %v280 = vld [vmem:[%s186 + $0x96] sm:$0xff]
        %v281 = vld [vmem:[%s186 + $0xa6] sm:$0xff]
        %v282 = vld [vmem:[%s186 + $0xb6] sm:$0xff]
        %v283 = vld [vmem:[%s186 + $0xc6] sm:$0xff]
        %v284 = vld [vmem:[%s186 + $0xd6] sm:$0xff]
        %v285 = vld [vmem:[%s1] sm:$0x1]
        %v286 = vld [vmem:[%s1 + $0x1] sm:$0x1]
        %v287 = vld [vmem:[%s1 + $0x2] sm:$0x1]
        %v288 = vld [vmem:[%s1 + $0x3] sm:$0x1]
        %v289 = vld [vmem:[%s1 + $0x4] sm:$0x1]
        %v290 = vld [vmem:[%s1 + $0x5] sm:$0x1]
        %v291 = vld [vmem:[%s1 + $0x6] sm:$0x1]
        %v292 = vld [vmem:[%s1 + $0x7] sm:$0x1]
        %v293 = vld [vmem:[%s1 + $0x8] sm:$0x1]
        %v294 = vld [vmem:[%s1 + $0x9] sm:$0x1]
        %v295 = vld [vmem:[%s1 + $0xa] sm:$0x1]
        %v296 = vld [vmem:[%s1 + $0xb] sm:$0x1]
        %v297 = vld [vmem:[%s1 + $0xc] sm:$0x1]
        %v298 = vld [vmem:[%s1 + $0xd] sm:$0x1]
        %v299 = vld [vmem:[%s1 + $0xe] sm:$0x1]
        %v300 = vld [vmem:[%s1 + $0xf] sm:$0x1]
        %v301 = vld [vmem:[%s1 + $0x10] sm:$0x1]
        %v302 = vld [vmem:[%s1 + $0x11] sm:$0x1]
        %v303 = vld [vmem:[%s1 + $0x12] sm:$0x1]
        %v304 = vld [vmem:[%s1 + $0x13] sm:$0x1]
        %v305 = vld [vmem:[%s1 + $0x14] sm:$0x1]
        %v306 = vld [vmem:[%s1 + $0x15] sm:$0x1]
        %v307 = vld [vmem:[%s1 + $0x16] sm:$0x1]
        %v308 = vld [vmem:[%s1 + $0x17] sm:$0x1]
        %v309 = vld [vmem:[%s1 + $0x18] sm:$0x1]
        %v310 = vld [vmem:[%s1 + $0x19] sm:$0x1]
        %v311 = vld [vmem:[%s1 + $0x1a] sm:$0x1]
        %v312 = vld [vmem:[%s1 + $0x1b] sm:$0x1]
        %v313 = vld [vmem:[%s1 + $0x1c] sm:$0x1]
        %v314 = vld [vmem:[%s1 + $0x1d] sm:$0x1]
        %v315 = vld [vmem:[%s1 + $0x1e] sm:$0x1]
        %v316 = vld [vmem:[%s1 + $0x1f] sm:$0x1]
        %v317 = vld [vmem:[%s1 + $0x20] sm:$0x1]
        %v318 = vld [vmem:[%s1 + $0x21] sm:$0x1]
        %v319 = vld [vmem:[%s1 + $0x22] sm:$0x1]
        %v320 = vld [vmem:[%s1 + $0x23] sm:$0x1]
        %v321 = vld [vmem:[%s1 + $0x24] sm:$0x1]
        %v322 = vld [vmem:[%s1 + $0x25] sm:$0x1]
        %v323 = vld [vmem:[%s1 + $0x26] sm:$0x1]
        %v324 = vld [vmem:[%s1 + $0x27] sm:$0x1]
        %v325 = vld [vmem:[%s1 + $0x28] sm:$0x1]
        %v326 = vld [vmem:[%s1 + $0x29] sm:$0x1]
        %v327 = vld [vmem:[%s1 + $0x2a] sm:$0x1]
        %v328 = vld [vmem:[%s1 + $0x2b] sm:$0x1]
        %v329 = vld [vmem:[%s1 + $0x2c] sm:$0x1]
        %v330 = vld [vmem:[%s1 + $0x2d] sm:$0x1]
        %v331 = vld [vmem:[%s1 + $0x2e] sm:$0x1]
        %v332 = vld [vmem:[%s1 + $0x2f] sm:$0x1]
        %v333 = vld [vmem:[%s1 + $0x30] sm:$0x1]
        %v334 = vld [vmem:[%s2] sm:$0x1]
        %v335 = vperm.slane %v285, 0
        %v336 = vmul.f32 %v187, %v335
        %v337 = vmul.f32 %v188, %v335
        %v338 = vmul.f32 %v189, %v335
        %v339 = vmul.f32 %v190, %v335
        %v340 = vmul.f32 %v191, %v335
        %v341 = vmul.f32 %v192, %v335
        %v342 = vmul.f32 %v193, %v335
        %v343 = vmul.f32 %v194, %v335
        %v344 = vperm.slane %v286, 0
        %v345 = vmul.f32 %v201, %v344
        %v346 = vmul.f32 %v202, %v344
        %v347 = vmul.f32 %v203, %v344
        %v348 = vmul.f32 %v204, %v344
        %v349 = vmul.f32 %v205, %v344
        %v350 = vmul.f32 %v206, %v344
        %v351 = vmul.f32 %v207, %v344
        %v352 = vmul.f32 %v208, %v344
        %v353 = vperm.slane %v287, 0
        %v354 = vmul.f32 %v215, %v353
        %v355 = vmul.f32 %v216, %v353
        %v356 = vmul.f32 %v217, %v353
        %v357 = vmul.f32 %v218, %v353
        %v358 = vmul.f32 %v219, %v353
        %v359 = vmul.f32 %v220, %v353
        %v360 = vmul.f32 %v221, %v353
        %v361 = vmul.f32 %v222, %v353
        %v362 = vadd.f32 %v336, %v354
        %v363 = vadd.f32 %v337, %v355
        %v364 = vadd.f32 %v338, %v356
        %v365 = vadd.f32 %v339, %v357
        %v366 = vadd.f32 %v340, %v358
        %v367 = vadd.f32 %v341, %v359
        %v368 = vadd.f32 %v342, %v360
        %v369 = vadd.f32 %v343, %v361
        %v370 = vperm.slane %v288, 0
        %v371 = vmul.f32 %v229, %v370
        %v372 = vmul.f32 %v230, %v370
        %v373 = vmul.f32 %v231, %v370
        %v374 = vmul.f32 %v232, %v370
        %v375 = vmul.f32 %v233, %v370
        %v376 = vmul.f32 %v234, %v370
        %v377 = vmul.f32 %v235, %v370
        %v378 = vmul.f32 %v236, %v370
        %v379 = vadd.f32 %v345, %v371
        %v380 = vadd.f32 %v346, %v372
        %v381 = vadd.f32 %v347, %v373
        %v382 = vadd.f32 %v348, %v374
        %v383 = vadd.f32 %v349, %v375
        %v384 = vadd.f32 %v350, %v376
        %v385 = vadd.f32 %v351, %v377
        %v386 = vadd.f32 %v352, %v378
        %v387 = vperm.slane %v289, 0
        %v388 = vmul.f32 %v243, %v387
        %v389 = vmul.f32 %v244, %v387
        %v390 = vmul.f32 %v245, %v387
        %v391 = vmul.f32 %v246, %v387
        %v392 = vmul.f32 %v247, %v387
        %v393 = vmul.f32 %v248, %v387
        %v394 = vmul.f32 %v249, %v387
        %v395 = vmul.f32 %v250, %v387
        %v396 = vadd.f32 %v362, %v388
        %v397 = vadd.f32 %v363, %v389
        %v398 = vadd.f32 %v364, %v390
        %v399 = vadd.f32 %v365, %v391
        %v400 = vadd.f32 %v366, %v392
        %v401 = vadd.f32 %v367, %v393
        %v402 = vadd.f32 %v368, %v394
        %v403 = vadd.f32 %v369, %v395
        %v404 = vperm.slane %v290, 0
        %v405 = vmul.f32 %v257, %v404
        %v406 = vmul.f32 %v258, %v404
        %v407 = vmul.f32 %v259, %v404
        %v408 = vmul.f32 %v260, %v404
        %v409 = vmul.f32 %v261, %v404
        %v410 = vmul.f32 %v262, %v404
        %v411 = vmul.f32 %v263, %v404
        %v412 = vmul.f32 %v264, %v404
        %v413 = vadd.f32 %v379, %v405
        %v414 = vadd.f32 %v380, %v406
        %v415 = vadd.f32 %v381, %v407
        %v416 = vadd.f32 %v382, %v408
        %v417 = vadd.f32 %v383, %v409
        %v418 = vadd.f32 %v384, %v410
        %v419 = vadd.f32 %v385, %v411
        %v420 = vadd.f32 %v386, %v412
        %v421 = vperm.slane %v291, 0
        %v422 = vmul.f32 %v271, %v421
        %v423 = vmul.f32 %v272, %v421
        %v424 = vmul.f32 %v273, %v421
        %v425 = vmul.f32 %v274, %v421
        %v426 = vmul.f32 %v275, %v421
        %v427 = vmul.f32 %v276, %v421
        %v428 = vmul.f32 %v277, %v421
        %v429 = vmul.f32 %v278, %v421
        %v430 = vadd.f32 %v396, %v422
        %v431 = vadd.f32 %v397, %v423
        %v432 = vadd.f32 %v398, %v424
        %v433 = vadd.f32 %v399, %v425
        %v434 = vadd.f32 %v400, %v426
        %v435 = vadd.f32 %v401, %v427
        %v436 = vadd.f32 %v402, %v428
        %v437 = vadd.f32 %v403, %v429
        %v438 = vperm.slane %v292, 0
        %v439 = vmul.f32 %v188, %v438
        %v440 = vmul.f32 %v189, %v438
        %v441 = vmul.f32 %v190, %v438
        %v442 = vmul.f32 %v191, %v438
        %v443 = vmul.f32 %v192, %v438
        %v444 = vmul.f32 %v193, %v438
        %v445 = vmul.f32 %v194, %v438
        %v446 = vmul.f32 %v195, %v438
        %v447 = vadd.f32 %v413, %v439
        %v448 = vadd.f32 %v414, %v440
        %v449 = vadd.f32 %v415, %v441
        %v450 = vadd.f32 %v416, %v442
        %v451 = vadd.f32 %v417, %v443
        %v452 = vadd.f32 %v418, %v444
        %v453 = vadd.f32 %v419, %v445
        %v454 = vadd.f32 %v420, %v446
        %v455 = vperm.slane %v293, 0
        %v456 = vmul.f32 %v202, %v455
        %v457 = vmul.f32 %v203, %v455
        %v458 = vmul.f32 %v204, %v455
        %v459 = vmul.f32 %v205, %v455
        %v460 = vmul.f32 %v206, %v455
        %v461 = vmul.f32 %v207, %v455
        %v462 = vmul.f32 %v208, %v455
        %v463 = vmul.f32 %v209, %v455
        %v464 = vadd.f32 %v430, %v456
        %v465 = vadd.f32 %v431, %v457
        %v466 = vadd.f32 %v432, %v458
        %v467 = vadd.f32 %v433, %v459
        %v468 = vadd.f32 %v434, %v460
        %v469 = vadd.f32 %v435, %v461
        %v470 = vadd.f32 %v436, %v462
        %v471 = vadd.f32 %v437, %v463
        %v472 = vperm.slane %v294, 0
        %v473 = vmul.f32 %v216, %v472
        %v474 = vmul.f32 %v217, %v472
        %v475 = vmul.f32 %v218, %v472
        %v476 = vmul.f32 %v219, %v472
        %v477 = vmul.f32 %v220, %v472
        %v478 = vmul.f32 %v221, %v472
        %v479 = vmul.f32 %v222, %v472
        %v480 = vmul.f32 %v223, %v472
        %v481 = vadd.f32 %v447, %v473
        %v482 = vadd.f32 %v448, %v474
        %v483 = vadd.f32 %v449, %v475
        %v484 = vadd.f32 %v450, %v476
        %v485 = vadd.f32 %v451, %v477
        %v486 = vadd.f32 %v452, %v478
        %v487 = vadd.f32 %v453, %v479
        %v488 = vadd.f32 %v454, %v480
        %v489 = vperm.slane %v295, 0
        %v490 = vmul.f32 %v230, %v489
        %v491 = vmul.f32 %v231, %v489
        %v492 = vmul.f32 %v232, %v489
        %v493 = vmul.f32 %v233, %v489
        %v494 = vmul.f32 %v234, %v489
        %v495 = vmul.f32 %v235, %v489
        %v496 = vmul.f32 %v236, %v489
        %v497 = vmul.f32 %v237, %v489
        %v498 = vadd.f32 %v464, %v490
        %v499 = vadd.f32 %v465, %v491
        %v500 = vadd.f32 %v466, %v492
        %v501 = vadd.f32 %v467, %v493
        %v502 = vadd.f32 %v468, %v494
        %v503 = vadd.f32 %v469, %v495
        %v504 = vadd.f32 %v470, %v496
        %v505 = vadd.f32 %v471, %v497
        %v506 = vperm.slane %v296, 0
        %v507 = vmul.f32 %v244, %v506
        %v508 = vmul.f32 %v245, %v506
        %v509 = vmul.f32 %v246, %v506
        %v510 = vmul.f32 %v247, %v506
        %v511 = vmul.f32 %v248, %v506
        %v512 = vmul.f32 %v249, %v506
        %v513 = vmul.f32 %v250, %v506
        %v514 = vmul.f32 %v251, %v506
        %v515 = vadd.f32 %v481, %v507
        %v516 = vadd.f32 %v482, %v508
        %v517 = vadd.f32 %v483, %v509
        %v518 = vadd.f32 %v484, %v510
        %v519 = vadd.f32 %v485, %v511
        %v520 = vadd.f32 %v486, %v512
        %v521 = vadd.f32 %v487, %v513
        %v522 = vadd.f32 %v488, %v514
        %v523 = vperm.slane %v297, 0
        %v524 = vmul.f32 %v258, %v523
        %v525 = vmul.f32 %v259, %v523
        %v526 = vmul.f32 %v260, %v523
        %v527 = vmul.f32 %v261, %v523
        %v528 = vmul.f32 %v262, %v523
        %v529 = vmul.f32 %v263, %v523
        %v530 = vmul.f32 %v264, %v523
        %v531 = vmul.f32 %v265, %v523
        %v532 = vadd.f32 %v498, %v524
        %v533 = vadd.f32 %v499, %v525
        %v534 = vadd.f32 %v500, %v526
        %v535 = vadd.f32 %v501, %v527
        %v536 = vadd.f32 %v502, %v528
        %v537 = vadd.f32 %v503, %v529
        %v538 = vadd.f32 %v504, %v530
        %v539 = vadd.f32 %v505, %v531
        %v540 = vperm.slane %v298, 0
        %v541 = vmul.f32 %v272, %v540
        %v542 = vmul.f32 %v273, %v540
        %v543 = vmul.f32 %v274, %v540
        %v544 = vmul.f32 %v275, %v540
        %v545 = vmul.f32 %v276, %v540
        %v546 = vmul.f32 %v277, %v540
        %v547 = vmul.f32 %v278, %v540
        %v548 = vmul.f32 %v279, %v540
        %v549 = vadd.f32 %v515, %v541
        %v550 = vadd.f32 %v516, %v542
        %v551 = vadd.f32 %v517, %v543
        %v552 = vadd.f32 %v518, %v544
        %v553 = vadd.f32 %v519, %v545
        %v554 = vadd.f32 %v520, %v546
        %v555 = vadd.f32 %v521, %v547
        %v556 = vadd.f32 %v522, %v548
        %v557 = vperm.slane %v299, 0
        %v558 = vmul.f32 %v189, %v557
        %v559 = vmul.f32 %v190, %v557
        %v560 = vmul.f32 %v191, %v557
        %v561 = vmul.f32 %v192, %v557
        %v562 = vmul.f32 %v193, %v557
        %v563 = vmul.f32 %v194, %v557
        %v564 = vmul.f32 %v195, %v557
        %v565 = vmul.f32 %v196, %v557
        %v566 = vadd.f32 %v532, %v558
        %v567 = vadd.f32 %v533, %v559
        %v568 = vadd.f32 %v534, %v560
        %v569 = vadd.f32 %v535, %v561
        %v570 = vadd.f32 %v536, %v562
        %v571 = vadd.f32 %v537, %v563
        %v572 = vadd.f32 %v538, %v564
        %v573 = vadd.f32 %v539, %v565
        %v574 = vperm.slane %v300, 0
        %v575 = vmul.f32 %v203, %v574
        %v576 = vmul.f32 %v204, %v574
        %v577 = vmul.f32 %v205, %v574
        %v578 = vmul.f32 %v206, %v574
        %v579 = vmul.f32 %v207, %v574
        %v580 = vmul.f32 %v208, %v574
        %v581 = vmul.f32 %v209, %v574
        %v582 = vmul.f32 %v210, %v574
        %v583 = vadd.f32 %v549, %v575
        %v584 = vadd.f32 %v550, %v576
        %v585 = vadd.f32 %v551, %v577
        %v586 = vadd.f32 %v552, %v578
        %v587 = vadd.f32 %v553, %v579
        %v588 = vadd.f32 %v554, %v580
        %v589 = vadd.f32 %v555, %v581
        %v590 = vadd.f32 %v556, %v582
        %v591 = vperm.slane %v301, 0
        %v592 = vmul.f32 %v217, %v591
        %v593 = vmul.f32 %v218, %v591
        %v594 = vmul.f32 %v219, %v591
        %v595 = vmul.f32 %v220, %v591
        %v596 = vmul.f32 %v221, %v591
        %v597 = vmul.f32 %v222, %v591
        %v598 = vmul.f32 %v223, %v591
        %v599 = vmul.f32 %v224, %v591
        %v600 = vadd.f32 %v566, %v592
        %v601 = vadd.f32 %v567, %v593
        %v602 = vadd.f32 %v568, %v594
        %v603 = vadd.f32 %v569, %v595
        %v604 = vadd.f32 %v570, %v596
        %v605 = vadd.f32 %v571, %v597
        %v606 = vadd.f32 %v572, %v598
        %v607 = vadd.f32 %v573, %v599
        %v608 = vperm.slane %v302, 0
        %v609 = vmul.f32 %v231, %v608
        %v610 = vmul.f32 %v232, %v608
        %v611 = vmul.f32 %v233, %v608
        %v612 = vmul.f32 %v234, %v608
        %v613 = vmul.f32 %v235, %v608
        %v614 = vmul.f32 %v236, %v608
        %v615 = vmul.f32 %v237, %v608
        %v616 = vmul.f32 %v238, %v608
        %v617 = vadd.f32 %v583, %v609
        %v618 = vadd.f32 %v584, %v610
        %v619 = vadd.f32 %v585, %v611
        %v620 = vadd.f32 %v586, %v612
        %v621 = vadd.f32 %v587, %v613
        %v622 = vadd.f32 %v588, %v614
        %v623 = vadd.f32 %v589, %v615
        %v624 = vadd.f32 %v590, %v616
        %v625 = vperm.slane %v303, 0
        %v626 = vmul.f32 %v245, %v625
        %v627 = vmul.f32 %v246, %v625
        %v628 = vmul.f32 %v247, %v625
        %v629 = vmul.f32 %v248, %v625
        %v630 = vmul.f32 %v249, %v625
        %v631 = vmul.f32 %v250, %v625
        %v632 = vmul.f32 %v251, %v625
        %v633 = vmul.f32 %v252, %v625
        %v634 = vadd.f32 %v600, %v626
        %v635 = vadd.f32 %v601, %v627
        %v636 = vadd.f32 %v602, %v628
        %v637 = vadd.f32 %v603, %v629
        %v638 = vadd.f32 %v604, %v630
        %v639 = vadd.f32 %v605, %v631
        %v640 = vadd.f32 %v606, %v632
        %v641 = vadd.f32 %v607, %v633
        %v642 = vperm.slane %v304, 0
        %v643 = vmul.f32 %v259, %v642
        %v644 = vmul.f32 %v260, %v642
        %v645 = vmul.f32 %v261, %v642
        %v646 = vmul.f32 %v262, %v642
        %v647 = vmul.f32 %v263, %v642
        %v648 = vmul.f32 %v264, %v642
        %v649 = vmul.f32 %v265, %v642
        %v650 = vmul.f32 %v266, %v642
        %v651 = vadd.f32 %v617, %v643
        %v652 = vadd.f32 %v618, %v644
        %v653 = vadd.f32 %v619, %v645
        %v654 = vadd.f32 %v620, %v646
        %v655 = vadd.f32 %v621, %v647
        %v656 = vadd.f32 %v622, %v648
        %v657 = vadd.f32 %v623, %v649
        %v658 = vadd.f32 %v624, %v650
        %v659 = vperm.slane %v305, 0
        %v660 = vmul.f32 %v273, %v659
        %v661 = vmul.f32 %v274, %v659
        %v662 = vmul.f32 %v275, %v659
        %v663 = vmul.f32 %v276, %v659
        %v664 = vmul.f32 %v277, %v659
        %v665 = vmul.f32 %v278, %v659
        %v666 = vmul.f32 %v279, %v659
        %v667 = vmul.f32 %v280, %v659
        %v668 = vadd.f32 %v634, %v660
        %v669 = vadd.f32 %v635, %v661
        %v670 = vadd.f32 %v636, %v662
        %v671 = vadd.f32 %v637, %v663
        %v672 = vadd.f32 %v638, %v664
        %v673 = vadd.f32 %v639, %v665
        %v674 = vadd.f32 %v640, %v666
        %v675 = vadd.f32 %v641, %v667
        %v676 = vperm.slane %v306, 0
        %v677 = vmul.f32 %v190, %v676
        %v678 = vmul.f32 %v191, %v676
        %v679 = vmul.f32 %v192, %v676
        %v680 = vmul.f32 %v193, %v676
        %v681 = vmul.f32 %v194, %v676
        %v682 = vmul.f32 %v195, %v676
        %v683 = vmul.f32 %v196, %v676
        %v684 = vmul.f32 %v197, %v676
        %v685 = vadd.f32 %v651, %v677
        %v686 = vadd.f32 %v652, %v678
        %v687 = vadd.f32 %v653, %v679
        %v688 = vadd.f32 %v654, %v680
        %v689 = vadd.f32 %v655, %v681
        %v690 = vadd.f32 %v656, %v682
        %v691 = vadd.f32 %v657, %v683
        %v692 = vadd.f32 %v658, %v684
        %v693 = vperm.slane %v307, 0
        %v694 = vmul.f32 %v204, %v693
        %v695 = vmul.f32 %v205, %v693
        %v696 = vmul.f32 %v206, %v693
        %v697 = vmul.f32 %v207, %v693
        %v698 = vmul.f32 %v208, %v693
        %v699 = vmul.f32 %v209, %v693
        %v700 = vmul.f32 %v210, %v693
        %v701 = vmul.f32 %v211, %v693
        %v702 = vadd.f32 %v668, %v694
        %v703 = vadd.f32 %v669, %v695
        %v704 = vadd.f32 %v670, %v696
        %v705 = vadd.f32 %v671, %v697
        %v706 = vadd.f32 %v672, %v698
        %v707 = vadd.f32 %v673, %v699
        %v708 = vadd.f32 %v674, %v700
        %v709 = vadd.f32 %v675, %v701
        %v710 = vperm.slane %v308, 0
        %v711 = vmul.f32 %v218, %v710
        %v712 = vmul.f32 %v219, %v710
        %v713 = vmul.f32 %v220, %v710
        %v714 = vmul.f32 %v221, %v710
        %v715 = vmul.f32 %v222, %v710
        %v716 = vmul.f32 %v223, %v710
        %v717 = vmul.f32 %v224, %v710
        %v718 = vmul.f32 %v225, %v710
        %v719 = vadd.f32 %v685, %v711
        %v720 = vadd.f32 %v686, %v712
        %v721 = vadd.f32 %v687, %v713
        %v722 = vadd.f32 %v688, %v714
        %v723 = vadd.f32 %v689, %v715
        %v724 = vadd.f32 %v690, %v716
        %v725 = vadd.f32 %v691, %v717
        %v726 = vadd.f32 %v692, %v718
        %v727 = vperm.slane %v309, 0
        %v728 = vmul.f32 %v232, %v727
        %v729 = vmul.f32 %v233, %v727
        %v730 = vmul.f32 %v234, %v727
        %v731 = vmul.f32 %v235, %v727
        %v732 = vmul.f32 %v236, %v727
        %v733 = vmul.f32 %v237, %v727
        %v734 = vmul.f32 %v238, %v727
        %v735 = vmul.f32 %v239, %v727
        %v736 = vadd.f32 %v702, %v728
        %v737 = vadd.f32 %v703, %v729
        %v738 = vadd.f32 %v704, %v730
        %v739 = vadd.f32 %v705, %v731
        %v740 = vadd.f32 %v706, %v732
        %v741 = vadd.f32 %v707, %v733
        %v742 = vadd.f32 %v708, %v734
        %v743 = vadd.f32 %v709, %v735
        %v744 = vperm.slane %v310, 0
        %v745 = vmul.f32 %v246, %v744
        %v746 = vmul.f32 %v247, %v744
        %v747 = vmul.f32 %v248, %v744
        %v748 = vmul.f32 %v249, %v744
        %v749 = vmul.f32 %v250, %v744
        %v750 = vmul.f32 %v251, %v744
        %v751 = vmul.f32 %v252, %v744
        %v752 = vmul.f32 %v253, %v744
        %v753 = vadd.f32 %v719, %v745
        %v754 = vadd.f32 %v720, %v746
        %v755 = vadd.f32 %v721, %v747
        %v756 = vadd.f32 %v722, %v748
        %v757 = vadd.f32 %v723, %v749
        %v758 = vadd.f32 %v724, %v750
        %v759 = vadd.f32 %v725, %v751
        %v760 = vadd.f32 %v726, %v752
        %v761 = vperm.slane %v311, 0
        %v762 = vmul.f32 %v260, %v761
        %v763 = vmul.f32 %v261, %v761
        %v764 = vmul.f32 %v262, %v761
        %v765 = vmul.f32 %v263, %v761
        %v766 = vmul.f32 %v264, %v761
        %v767 = vmul.f32 %v265, %v761
        %v768 = vmul.f32 %v266, %v761
        %v769 = vmul.f32 %v267, %v761
        %v770 = vadd.f32 %v736, %v762
        %v771 = vadd.f32 %v737, %v763
        %v772 = vadd.f32 %v738, %v764
        %v773 = vadd.f32 %v739, %v765
        %v774 = vadd.f32 %v740, %v766
        %v775 = vadd.f32 %v741, %v767
        %v776 = vadd.f32 %v742, %v768
        %v777 = vadd.f32 %v743, %v769
        %v778 = vperm.slane %v312, 0
        %v779 = vmul.f32 %v274, %v778
        %v780 = vmul.f32 %v275, %v778
        %v781 = vmul.f32 %v276, %v778
        %v782 = vmul.f32 %v277, %v778
        %v783 = vmul.f32 %v278, %v778
        %v784 = vmul.f32 %v279, %v778
        %v785 = vmul.f32 %v280, %v778
        %v786 = vmul.f32 %v281, %v778
        %v787 = vadd.f32 %v753, %v779
        %v788 = vadd.f32 %v754, %v780
        %v789 = vadd.f32 %v755, %v781
        %v790 = vadd.f32 %v756, %v782
        %v791 = vadd.f32 %v757, %v783
        %v792 = vadd.f32 %v758, %v784
        %v793 = vadd.f32 %v759, %v785
        %v794 = vadd.f32 %v760, %v786
        %v795 = vperm.slane %v313, 0
        %v796 = vmul.f32 %v191, %v795
        %v797 = vmul.f32 %v192, %v795
        %v798 = vmul.f32 %v193, %v795
        %v799 = vmul.f32 %v194, %v795
        %v800 = vmul.f32 %v195, %v795
        %v801 = vmul.f32 %v196, %v795
        %v802 = vmul.f32 %v197, %v795
        %v803 = vmul.f32 %v198, %v795
        %v804 = vadd.f32 %v770, %v796
        %v805 = vadd.f32 %v771, %v797
        %v806 = vadd.f32 %v772, %v798
        %v807 = vadd.f32 %v773, %v799
        %v808 = vadd.f32 %v774, %v800
        %v809 = vadd.f32 %v775, %v801
        %v810 = vadd.f32 %v776, %v802
        %v811 = vadd.f32 %v777, %v803
        %v812 = vperm.slane %v314, 0
        %v813 = vmul.f32 %v205, %v812
        %v814 = vmul.f32 %v206, %v812
        %v815 = vmul.f32 %v207, %v812
        %v816 = vmul.f32 %v208, %v812
        %v817 = vmul.f32 %v209, %v812
        %v818 = vmul.f32 %v210, %v812
        %v819 = vmul.f32 %v211, %v812
        %v820 = vmul.f32 %v212, %v812
        %v821 = vadd.f32 %v787, %v813
        %v822 = vadd.f32 %v788, %v814
        %v823 = vadd.f32 %v789, %v815
        %v824 = vadd.f32 %v790, %v816
        %v825 = vadd.f32 %v791, %v817
        %v826 = vadd.f32 %v792, %v818
        %v827 = vadd.f32 %v793, %v819
        %v828 = vadd.f32 %v794, %v820
        %v829 = vperm.slane %v315, 0
        %v830 = vmul.f32 %v219, %v829
        %v831 = vmul.f32 %v220, %v829
        %v832 = vmul.f32 %v221, %v829
        %v833 = vmul.f32 %v222, %v829
        %v834 = vmul.f32 %v223, %v829
        %v835 = vmul.f32 %v224, %v829
        %v836 = vmul.f32 %v225, %v829
        %v837 = vmul.f32 %v226, %v829
        %v838 = vadd.f32 %v804, %v830
        %v839 = vadd.f32 %v805, %v831
        %v840 = vadd.f32 %v806, %v832
        %v841 = vadd.f32 %v807, %v833
        %v842 = vadd.f32 %v808, %v834
        %v843 = vadd.f32 %v809, %v835
        %v844 = vadd.f32 %v810, %v836
        %v845 = vadd.f32 %v811, %v837
        %v846 = vperm.slane %v316, 0
        %v847 = vmul.f32 %v233, %v846
        %v848 = vmul.f32 %v234, %v846
        %v849 = vmul.f32 %v235, %v846
        %v850 = vmul.f32 %v236, %v846
        %v851 = vmul.f32 %v237, %v846
        %v852 = vmul.f32 %v238, %v846
        %v853 = vmul.f32 %v239, %v846
        %v854 = vmul.f32 %v240, %v846
        %v855 = vadd.f32 %v821, %v847
        %v856 = vadd.f32 %v822, %v848
        %v857 = vadd.f32 %v823, %v849
        %v858 = vadd.f32 %v824, %v850
        %v859 = vadd.f32 %v825, %v851
        %v860 = vadd.f32 %v826, %v852
        %v861 = vadd.f32 %v827, %v853
        %v862 = vadd.f32 %v828, %v854
        %v863 = vperm.slane %v317, 0
        %v864 = vmul.f32 %v247, %v863
        %v865 = vmul.f32 %v248, %v863
        %v866 = vmul.f32 %v249, %v863
        %v867 = vmul.f32 %v250, %v863
        %v868 = vmul.f32 %v251, %v863
        %v869 = vmul.f32 %v252, %v863
        %v870 = vmul.f32 %v253, %v863
        %v871 = vmul.f32 %v254, %v863
        %v872 = vadd.f32 %v838, %v864
        %v873 = vadd.f32 %v839, %v865
        %v874 = vadd.f32 %v840, %v866
        %v875 = vadd.f32 %v841, %v867
        %v876 = vadd.f32 %v842, %v868
        %v877 = vadd.f32 %v843, %v869
        %v878 = vadd.f32 %v844, %v870
        %v879 = vadd.f32 %v845, %v871
        %v880 = vperm.slane %v318, 0
        %v881 = vmul.f32 %v261, %v880
        %v882 = vmul.f32 %v262, %v880
        %v883 = vmul.f32 %v263, %v880
        %v884 = vmul.f32 %v264, %v880
        %v885 = vmul.f32 %v265, %v880
        %v886 = vmul.f32 %v266, %v880
        %v887 = vmul.f32 %v267, %v880
        %v888 = vmul.f32 %v268, %v880
        %v889 = vadd.f32 %v855, %v881
        %v890 = vadd.f32 %v856, %v882
        %v891 = vadd.f32 %v857, %v883
        %v892 = vadd.f32 %v858, %v884
        %v893 = vadd.f32 %v859, %v885
        %v894 = vadd.f32 %v860, %v886
        %v895 = vadd.f32 %v861, %v887
        %v896 = vadd.f32 %v862, %v888
        %v897 = vperm.slane %v319, 0
        %v898 = vmul.f32 %v275, %v897
        %v899 = vmul.f32 %v276, %v897
        %v900 = vmul.f32 %v277, %v897
        %v901 = vmul.f32 %v278, %v897
        %v902 = vmul.f32 %v279, %v897
        %v903 = vmul.f32 %v280, %v897
        %v904 = vmul.f32 %v281, %v897
        %v905 = vmul.f32 %v282, %v897
        %v906 = vadd.f32 %v872, %v898
        %v907 = vadd.f32 %v873, %v899
        %v908 = vadd.f32 %v874, %v900
        %v909 = vadd.f32 %v875, %v901
        %v910 = vadd.f32 %v876, %v902
        %v911 = vadd.f32 %v877, %v903
        %v912 = vadd.f32 %v878, %v904
        %v913 = vadd.f32 %v879, %v905
        %v914 = vperm.slane %v320, 0
        %v915 = vmul.f32 %v192, %v914
        %v916 = vmul.f32 %v193, %v914
        %v917 = vmul.f32 %v194, %v914
        %v918 = vmul.f32 %v195, %v914
        %v919 = vmul.f32 %v196, %v914
        %v920 = vmul.f32 %v197, %v914
        %v921 = vmul.f32 %v198, %v914
        %v922 = vmul.f32 %v199, %v914
        %v923 = vadd.f32 %v889, %v915
        %v924 = vadd.f32 %v890, %v916
        %v925 = vadd.f32 %v891, %v917
        %v926 = vadd.f32 %v892, %v918
        %v927 = vadd.f32 %v893, %v919
        %v928 = vadd.f32 %v894, %v920
        %v929 = vadd.f32 %v895, %v921
        %v930 = vadd.f32 %v896, %v922
        %v931 = vperm.slane %v321, 0
        %v932 = vmul.f32 %v206, %v931
        %v933 = vmul.f32 %v207, %v931
        %v934 = vmul.f32 %v208, %v931
        %v935 = vmul.f32 %v209, %v931
        %v936 = vmul.f32 %v210, %v931
        %v937 = vmul.f32 %v211, %v931
        %v938 = vmul.f32 %v212, %v931
        %v939 = vmul.f32 %v213, %v931
        %v940 = vadd.f32 %v906, %v932
        %v941 = vadd.f32 %v907, %v933
        %v942 = vadd.f32 %v908, %v934
        %v943 = vadd.f32 %v909, %v935
        %v944 = vadd.f32 %v910, %v936
        %v945 = vadd.f32 %v911, %v937
        %v946 = vadd.f32 %v912, %v938
        %v947 = vadd.f32 %v913, %v939
        %v948 = vperm.slane %v322, 0
        %v949 = vmul.f32 %v220, %v948
        %v950 = vmul.f32 %v221, %v948
        %v951 = vmul.f32 %v222, %v948
        %v952 = vmul.f32 %v223, %v948
        %v953 = vmul.f32 %v224, %v948
        %v954 = vmul.f32 %v225, %v948
        %v955 = vmul.f32 %v226, %v948
        %v956 = vmul.f32 %v227, %v948
        %v957 = vadd.f32 %v923, %v949
        %v958 = vadd.f32 %v924, %v950
        %v959 = vadd.f32 %v925, %v951
        %v960 = vadd.f32 %v926, %v952
        %v961 = vadd.f32 %v927, %v953
        %v962 = vadd.f32 %v928, %v954
        %v963 = vadd.f32 %v929, %v955
        %v964 = vadd.f32 %v930, %v956
        %v965 = vperm.slane %v323, 0
        %v966 = vmul.f32 %v234, %v965
        %v967 = vmul.f32 %v235, %v965
        %v968 = vmul.f32 %v236, %v965
        %v969 = vmul.f32 %v237, %v965
        %v970 = vmul.f32 %v238, %v965
        %v971 = vmul.f32 %v239, %v965
        %v972 = vmul.f32 %v240, %v965
        %v973 = vmul.f32 %v241, %v965
        %v974 = vadd.f32 %v940, %v966
        %v975 = vadd.f32 %v941, %v967
        %v976 = vadd.f32 %v942, %v968
        %v977 = vadd.f32 %v943, %v969
        %v978 = vadd.f32 %v944, %v970
        %v979 = vadd.f32 %v945, %v971
        %v980 = vadd.f32 %v946, %v972
        %v981 = vadd.f32 %v947, %v973
        %v982 = vperm.slane %v324, 0
        %v983 = vmul.f32 %v248, %v982
        %v984 = vmul.f32 %v249, %v982
        %v985 = vmul.f32 %v250, %v982
        %v986 = vmul.f32 %v251, %v982
        %v987 = vmul.f32 %v252, %v982
        %v988 = vmul.f32 %v253, %v982
        %v989 = vmul.f32 %v254, %v982
        %v990 = vmul.f32 %v255, %v982
        %v991 = vadd.f32 %v957, %v983
        %v992 = vadd.f32 %v958, %v984
        %v993 = vadd.f32 %v959, %v985
        %v994 = vadd.f32 %v960, %v986
        %v995 = vadd.f32 %v961, %v987
        %v996 = vadd.f32 %v962, %v988
        %v997 = vadd.f32 %v963, %v989
        %v998 = vadd.f32 %v964, %v990
        %v999 = vperm.slane %v325, 0
        %v1000 = vmul.f32 %v262, %v999
        %v1001 = vmul.f32 %v263, %v999
        %v1002 = vmul.f32 %v264, %v999
        %v1003 = vmul.f32 %v265, %v999
        %v1004 = vmul.f32 %v266, %v999
        %v1005 = vmul.f32 %v267, %v999
        %v1006 = vmul.f32 %v268, %v999
        %v1007 = vmul.f32 %v269, %v999
        %v1008 = vadd.f32 %v974, %v1000
        %v1009 = vadd.f32 %v975, %v1001
        %v1010 = vadd.f32 %v976, %v1002
        %v1011 = vadd.f32 %v977, %v1003
        %v1012 = vadd.f32 %v978, %v1004
        %v1013 = vadd.f32 %v979, %v1005
        %v1014 = vadd.f32 %v980, %v1006
        %v1015 = vadd.f32 %v981, %v1007
        %v1016 = vperm.slane %v326, 0
        %v1017 = vmul.f32 %v276, %v1016
        %v1018 = vmul.f32 %v277, %v1016
        %v1019 = vmul.f32 %v278, %v1016
        %v1020 = vmul.f32 %v279, %v1016
        %v1021 = vmul.f32 %v280, %v1016
        %v1022 = vmul.f32 %v281, %v1016
        %v1023 = vmul.f32 %v282, %v1016
        %v1024 = vmul.f32 %v283, %v1016
        %v1025 = vadd.f32 %v991, %v1017
        %v1026 = vadd.f32 %v992, %v1018
        %v1027 = vadd.f32 %v993, %v1019
        %v1028 = vadd.f32 %v994, %v1020
        %v1029 = vadd.f32 %v995, %v1021
        %v1030 = vadd.f32 %v996, %v1022
        %v1031 = vadd.f32 %v997, %v1023
        %v1032 = vadd.f32 %v998, %v1024
        %v1033 = vperm.slane %v327, 0
        %v1034 = vmul.f32 %v193, %v1033
        %v1035 = vmul.f32 %v194, %v1033
        %v1036 = vmul.f32 %v195, %v1033
        %v1037 = vmul.f32 %v196, %v1033
        %v1038 = vmul.f32 %v197, %v1033
        %v1039 = vmul.f32 %v198, %v1033
        %v1040 = vmul.f32 %v199, %v1033
        %v1041 = vmul.f32 %v200, %v1033
        %v1042 = vadd.f32 %v1008, %v1034
        %v1043 = vadd.f32 %v1009, %v1035
        %v1044 = vadd.f32 %v1010, %v1036
        %v1045 = vadd.f32 %v1011, %v1037
        %v1046 = vadd.f32 %v1012, %v1038
        %v1047 = vadd.f32 %v1013, %v1039
        %v1048 = vadd.f32 %v1014, %v1040
        %v1049 = vadd.f32 %v1015, %v1041
        %v1050 = vperm.slane %v328, 0
        %v1051 = vmul.f32 %v207, %v1050
        %v1052 = vmul.f32 %v208, %v1050
        %v1053 = vmul.f32 %v209, %v1050
        %v1054 = vmul.f32 %v210, %v1050
        %v1055 = vmul.f32 %v211, %v1050
        %v1056 = vmul.f32 %v212, %v1050
        %v1057 = vmul.f32 %v213, %v1050
        %v1058 = vmul.f32 %v214, %v1050
        %v1059 = vadd.f32 %v1025, %v1051
        %v1060 = vadd.f32 %v1026, %v1052
        %v1061 = vadd.f32 %v1027, %v1053
        %v1062 = vadd.f32 %v1028, %v1054
        %v1063 = vadd.f32 %v1029, %v1055
        %v1064 = vadd.f32 %v1030, %v1056
        %v1065 = vadd.f32 %v1031, %v1057
        %v1066 = vadd.f32 %v1032, %v1058
        %v1067 = vperm.slane %v329, 0
        %v1068 = vmul.f32 %v221, %v1067
        %v1069 = vmul.f32 %v222, %v1067
        %v1070 = vmul.f32 %v223, %v1067
        %v1071 = vmul.f32 %v224, %v1067
        %v1072 = vmul.f32 %v225, %v1067
        %v1073 = vmul.f32 %v226, %v1067
        %v1074 = vmul.f32 %v227, %v1067
        %v1075 = vmul.f32 %v228, %v1067
        %v1076 = vadd.f32 %v1042, %v1068
        %v1077 = vadd.f32 %v1043, %v1069
        %v1078 = vadd.f32 %v1044, %v1070
        %v1079 = vadd.f32 %v1045, %v1071
        %v1080 = vadd.f32 %v1046, %v1072
        %v1081 = vadd.f32 %v1047, %v1073
        %v1082 = vadd.f32 %v1048, %v1074
        %v1083 = vadd.f32 %v1049, %v1075
        %v1084 = vperm.slane %v330, 0
        %v1085 = vmul.f32 %v235, %v1084
        %v1086 = vmul.f32 %v236, %v1084
        %v1087 = vmul.f32 %v237, %v1084
        %v1088 = vmul.f32 %v238, %v1084
        %v1089 = vmul.f32 %v239, %v1084
        %v1090 = vmul.f32 %v240, %v1084
        %v1091 = vmul.f32 %v241, %v1084
        %v1092 = vmul.f32 %v242, %v1084
        %v1093 = vadd.f32 %v1059, %v1085
        %v1094 = vadd.f32 %v1060, %v1086
        %v1095 = vadd.f32 %v1061, %v1087
        %v1096 = vadd.f32 %v1062, %v1088
        %v1097 = vadd.f32 %v1063, %v1089
        %v1098 = vadd.f32 %v1064, %v1090
        %v1099 = vadd.f32 %v1065, %v1091
        %v1100 = vadd.f32 %v1066, %v1092
        %v1101 = vperm.slane %v331, 0
        %v1102 = vmul.f32 %v249, %v1101
        %v1103 = vmul.f32 %v250, %v1101
        %v1104 = vmul.f32 %v251, %v1101
        %v1105 = vmul.f32 %v252, %v1101
        %v1106 = vmul.f32 %v253, %v1101
        %v1107 = vmul.f32 %v254, %v1101
        %v1108 = vmul.f32 %v255, %v1101
        %v1109 = vmul.f32 %v256, %v1101
        %v1110 = vadd.f32 %v1076, %v1102
        %v1111 = vadd.f32 %v1077, %v1103
        %v1112 = vadd.f32 %v1078, %v1104
        %v1113 = vadd.f32 %v1079, %v1105
        %v1114 = vadd.f32 %v1080, %v1106
        %v1115 = vadd.f32 %v1081, %v1107
        %v1116 = vadd.f32 %v1082, %v1108
        %v1117 = vadd.f32 %v1083, %v1109
        %v1118 = vperm.slane %v332, 0
        %v1119 = vmul.f32 %v263, %v1118
        %v1120 = vmul.f32 %v264, %v1118
        %v1121 = vmul.f32 %v265, %v1118
        %v1122 = vmul.f32 %v266, %v1118
        %v1123 = vmul.f32 %v267, %v1118
        %v1124 = vmul.f32 %v268, %v1118
        %v1125 = vmul.f32 %v269, %v1118
        %v1126 = vmul.f32 %v270, %v1118
        %v1127 = vadd.f32 %v1093, %v1119
        %v1128 = vadd.f32 %v1094, %v1120
        %v1129 = vadd.f32 %v1095, %v1121
        %v1130 = vadd.f32 %v1096, %v1122
        %v1131 = vadd.f32 %v1097, %v1123
        %v1132 = vadd.f32 %v1098, %v1124
        %v1133 = vadd.f32 %v1099, %v1125
        %v1134 = vadd.f32 %v1100, %v1126
        %v1135 = vperm.slane %v333, 0
        %v1136 = vmul.f32 %v277, %v1135
        %v1137 = vmul.f32 %v278, %v1135
        %v1138 = vmul.f32 %v279, %v1135
        %v1139 = vmul.f32 %v280, %v1135
        %v1140 = vmul.f32 %v281, %v1135
        %v1141 = vmul.f32 %v282, %v1135
        %v1142 = vmul.f32 %v283, %v1135
        %v1143 = vmul.f32 %v284, %v1135
        %v1144 = vadd.f32 %v1110, %v1136
        %v1145 = vadd.f32 %v1111, %v1137
        %v1146 = vadd.f32 %v1112, %v1138
        %v1147 = vadd.f32 %v1113, %v1139
        %v1148 = vadd.f32 %v1114, %v1140
        %v1149 = vadd.f32 %v1115, %v1141
        %v1150 = vadd.f32 %v1116, %v1142
        %v1151 = vadd.f32 %v1117, %v1143
        %v1152 = vadd.f32 %v1144, %v1127
        %v1153 = vadd.f32 %v1145, %v1128
        %v1154 = vadd.f32 %v1146, %v1129
        %v1155 = vadd.f32 %v1147, %v1130
        %v1156 = vadd.f32 %v1148, %v1131
        %v1157 = vadd.f32 %v1149, %v1132
        %v1158 = vadd.f32 %v1150, %v1133
        %v1159 = vadd.f32 %v1151, %v1134
        %v1161 = vperm.slane %v334, 0
        %v1163 = vadd.f32 %v1152, %v1161
        %v1164 = vadd.f32 %v1153, %v1161
        %v1165 = vadd.f32 %v1154, %v1161
        %v1166 = vadd.f32 %v1155, %v1161
        %v1167 = vadd.f32 %v1156, %v1161
        %v1168 = vadd.f32 %v1157, %v1161
        %v1169 = vadd.f32 %v1158, %v1161
        %v1170 = vadd.f32 %v1159, %v1161
        %1171 = vst [vmem:[%s177] sm:$0xff] %v1163
        %1172 = vst [vmem:[%s177 + $0x8] sm:$0xff] %v1164
        %1173 = vst [vmem:[%s177 + $0x10] sm:$0xff] %v1165
        %1174 = vst [vmem:[%s177 + $0x18] sm:$0xff] %v1166
        %1175 = vst [vmem:[%s177 + $0x20] sm:$0xff] %v1167
        %1176 = vst [vmem:[%s177 + $0x28] sm:$0xff] %v1168
        %1177 = vst [vmem:[%s177 + $0x30] sm:$0xff] %v1169
        %1178 = vst [vmem:[%s177 + $0x38] sm:$0xff] %v1170
        %s1179 = sand.u32 %s107, 1
        %s1180 = scalar_lea.sflag [#allocation3], %s1179
        %s1181 = sand.u32 %s107, 1
        %s1182 = smul.addr %s1181, 64
        %s1183 = scalar_lea.vmem [#allocation2], %s1182
        // Predicated region
        $region33: #{tpu_custom_call.1} parent=31 // pred_check
          %p1184 = pneg %p117
        $region34: #{tpu_custom_call.1} parent=31 // pred_check_branch
          %1186 = sbr.rel (%p1184) target = $region36
        $region35: #{tpu_custom_call.1} parent=31 // pred_region
          %s1187 = smul.u32 8, %s22
          %1189 = vsyncadd %s1180, 0
          %s1190 = smul.addr %s21, 8
          %s1191 = sadd.s32 %s1187, %s1190
          %s1192 = smul.addr %s1191, 8
          %s1193 = scalar_lea.hbm %s3, %s1192
          %s1194 = sshll.u32 %s1183, 4
          %s1195 = int_to_ptr.vmem [resolvable:$true] %s1194
          %s1196 = sshll.u32 %s1193, 4
          %s1197 = int_to_ptr.hbm [resolvable:$true] %s1196
          %1202 = dma.vmem_to_hbm [thread:$0]  %s1195, 1024, %s1197, %s1180, 128, 128, 8
        $region36: #{tpu_custom_call.1} parent=31 // pred_fallthru
          _
      $region32: #{tpu_custom_call.1} parent=5 // pred_fallthru
        _
      %p1203 = scmp.le.s32.totalorder 2, %s12
      // Predicated region
      $region37: #{tpu_custom_call.1} parent=5 // pred_check
        %p1204 = pneg %p1203
      $region38: #{tpu_custom_call.1} parent=5 // pred_check_branch
        %1206 = sbr.rel (%p1204) target = $region40
      $region39: #{tpu_custom_call.1} parent=5 // pred_region
        %s1207 = ssub.s32 %s12, 2
        // Predicated region
        $region41: #{tpu_custom_call.1} parent=39 // pred_check
          %p1208 = pneg %p123
        $region42: #{tpu_custom_call.1} parent=39 // pred_check_branch
          %1210 = sbr.rel (%p1208) target = $region44
        $region43: #{tpu_custom_call.1} parent=39 // pred_region
          %s1211 = sand.u32 %s108, 1
          %s1212 = scalar_lea.sflag [#allocation3], %s1211
          %s1213 = sand.u32 %s108, 1
          %s1214 = smul.addr %s1213, 64
          %s1215 = scalar_lea.vmem [#allocation2], %s1214
          %1217 = dma.done %s1212, 1024
        $region44: #{tpu_custom_call.1} parent=39 // pred_fallthru
          _
      $region40: #{tpu_custom_call.1} parent=5 // pred_fallthru
        _
    $region6: #{tpu_custom_call.1} parent=1 // loop_footer
      %s16 = sadd.s32 1, %s12
    $region7: #{tpu_custom_call.1} parent=1 // loop_footer_branch
      %11 = sbr.rel target = $region3
    $region8: #{tpu_custom_call.1} parent=1 // loop_exit
      _
    %1218 = vsyncpa [#allocation3], 1
    %s1219 = scalar_lea.sflag [#allocation3], 1
    %1220 = vsyncpa %s1219, 1

</llo_original>
